<compile_context>
chip_gen: v5e
topology: v5e:2x2
jax: 0.10.0
libtpu: 0.0.40
codegen_flags: <defaults>
</compile_context>

<pallas_src>
import jax
import jax.numpy as jnp
import numpy as np
from jax import lax
from jax.experimental import pallas as pl
from jax.experimental.pallas import tpu as pltpu


# ----------------------------------------------------------------------------
# Pallas kernel
# ----------------------------------------------------------------------------
def make_wn_kernel(NB, T, IN, AUX, RES, DIL, SKP, RADIX, MAXD):
    CIN = RES + AUX              # channels of the concatenated [residual | aux]
    NT = NB * T
    CENTER = (RADIX - 1) // 2

    def kernel(dil_ref,                  # SMEM (L,) int32  (scalar prefetch)
               x_ref, y_ref,             # (NT, IN), (NT, AUX)  f32, flat time-major
               ws_ref,                   # (IN, RES)            bf16  start 1x1 conv
               wv_ref,                   # (1, RADIX*CIN, 2*DIL) bf16 fused dilated conv
               wo_ref,                   # (1, DIL, RES+SKP)    bf16  (last layer res cols zero)
               we_ref,                   # (SKP, 2*IN)          bf16  end 1x1 conv
               out_ref,                  # (NT, 2*IN)           f32
               padxy, sk_st):            # VMEM scratch (f32 accumulators)
        l = pl.program_id(1)
        n_layers = pl.num_programs(1)
        d = dil_ref[l]                   # this layer's dilation

        @pl.when(l == 0)
        def _init():
            padxy[...] = jnp.zeros_like(padxy)       # zero halos + state
            sk_st[...] = jnp.zeros_like(sk_st)
            # start conv: residual state written straight into the padded buffer
            h0 = jnp.dot(x_ref[...].astype(jnp.bfloat16), ws_ref[...],
                         preferred_element_type=jnp.float32)          # (NT, RES)
            for b in range(NB):
                padxy[b, MAXD:MAXD + T, :RES] = h0[b * T:(b + 1) * T, :]
                padxy[b, MAXD:MAXD + T, RES:] = y_ref[b * T:(b + 1) * T, :]

        # ---- fused dilated radix-tap conv: one bf16 MXU matmul per layer ----
        rows = []
        for b in range(NB):                      # per-batch halos (no cross-batch leak)
            cols = []
            for k in range(RADIX):
                if k == CENTER:
                    tap = padxy[b, MAXD:MAXD + T, :]          # aligned static slice
                else:
                    off = MAXD + (k - CENTER) * d
                    tap = padxy[b, pl.ds(off, T), :]
                cols.append(tap.astype(jnp.bfloat16))
            rows.append(jnp.concatenate(cols, axis=-1))        # (T, RADIX*CIN)
        taps = jnp.concatenate(rows, axis=0) if NB > 1 else rows[0]   # (NT, RADIX*CIN)

        z2 = jnp.dot(taps, wv_ref[0], preferred_element_type=jnp.float32)

        # gated activation (f32 on VPU/EUP): tanh(zw) * sigmoid(zf)
        z = jnp.tanh(z2[:, :DIL]) * jax.nn.sigmoid(z2[:, DIL:])

        # 1x1 output conv -> [residual | skip]   (last layer residual cols are zero)
        o = jnp.dot(z.astype(jnp.bfloat16), wo_ref[0],
                    preferred_element_type=jnp.float32)               # (NT, RES+SKP)

        # residual state updated in place inside the padded buffer (no x_st copy)
        for b in range(NB):
            padxy[b, MAXD:MAXD + T, :RES] += o[b * T:(b + 1) * T, :RES]
        sk_st[...] += o[:, RES:]                                      # cumulative skip

        @pl.when(l == n_layers - 1)
        def _final():
            out = jnp.dot(sk_st[...].astype(jnp.bfloat16), we_ref[...],
                          preferred_element_type=jnp.float32)
            out_ref[...] = out.astype(out_ref.dtype)

    return kernel


# ----------------------------------------------------------------------------
# Wrapper (layout transposes, BlockSpecs, grid)
# ----------------------------------------------------------------------------
def wn_forward_pallas(x_nct, y_nct, kernel_params, dilations, batch_tile=None):
    ws, wvf, wo, we = kernel_params
    N, IN, T = x_nct.shape
    AUX = y_nct.shape[1]
    L = len(dilations)
    RES = ws.shape[1]
    DIL = wo.shape[1]
    SKP = we.shape[0]
    CIN = RES + AUX
    RADIX = wvf.shape[1] // CIN
    MAXD = int(max(dilations))

    NB = N if batch_tile is None else batch_tile     # batch folded into the block
    assert N % NB == 0
    NBT = N // NB                                    # leading ("parallel") grid axis
    NT = NB * T

    # time-major, batch-flattened (N*T, C) layout -> matmul M dim = N*T
    x_f = jnp.transpose(x_nct, (0, 2, 1)).reshape(N * T, IN).astype(jnp.float32)
    y_f = jnp.transpose(y_nct, (0, 2, 1)).reshape(N * T, AUX).astype(jnp.float32)
    dil_arr = jnp.asarray(dilations, dtype=jnp.int32)

    bf = jnp.bfloat16
    ws_b, wvf_b, wo_b, we_b = ws.astype(bf), wvf.astype(bf), wo.astype(bf), we.astype(bf)

    kernel = make_wn_kernel(NB, T, IN, AUX, RES, DIL, SKP, RADIX, MAXD)

    grid_spec = pltpu.PrefetchScalarGridSpec(
        num_scalar_prefetch=1,
        grid=(NBT, L),
        in_specs=[
            pl.BlockSpec((NT, IN), lambda b, l, dref: (b, 0)),
            pl.BlockSpec((NT, AUX), lambda b, l, dref: (b, 0)),
            pl.BlockSpec((IN, RES), lambda b, l, dref: (0, 0)),
            pl.BlockSpec((1, RADIX * CIN, 2 * DIL), lambda b, l, dref: (l, 0, 0)),
            pl.BlockSpec((1, DIL, RES + SKP), lambda b, l, dref: (l, 0, 0)),
            pl.BlockSpec((SKP, 2 * IN), lambda b, l, dref: (0, 0)),
        ],
        out_specs=pl.BlockSpec((NT, 2 * IN), lambda b, l, dref: (b, 0)),
        scratch_shapes=[
            pltpu.VMEM((NB, T + 2 * MAXD, CIN), jnp.float32),  # padded [residual|aux] state
            pltpu.VMEM((NT, SKP), jnp.float32),                # cumulative skip
        ],
    )

    out_f = pl.pallas_call(
        kernel,
        out_shape=jax.ShapeDtypeStruct((N * T, 2 * IN), jnp.float32),
        grid_spec=grid_spec,
        compiler_params=pltpu.CompilerParams(
            dimension_semantics=("parallel", "arbitrary"),
            vmem_limit_bytes=48 * 1024 * 1024),
    )(dil_arr, x_f, y_f, ws_b, wvf_b, wo_b, we_b)

    out_nct = jnp.transpose(out_f.reshape(N, T, 2 * IN), (0, 2, 1))
    # .chunk(2, 1)
    return out_nct[:, :IN, :], out_nct[:, IN:, :]


# ----------------------------------------------------------------------------
# Deterministic parameter init (PyTorch weight layout) + kernel-layout repack
# ----------------------------------------------------------------------------
def init_params(key, IN, AUX, DIL, RES, SKP, depth, radix, zero_init=True):
    dilations = [2 ** i for i in range(depth)]
    keys = jax.random.split(key, 2 + 2 * depth)
    scale = 0.1
    w_start = jax.random.normal(keys[0], (RES, IN), jnp.float32) * scale
    wv_list, wo_list = [], []
    for i in range(depth):
        wv = jax.random.normal(keys[1 + 2 * i],
                               (2 * DIL, RES + AUX, radix), jnp.float32) * scale
        out_ch = SKP if i == depth - 1 else RES + SKP
        wo = jax.random.normal(keys[2 + 2 * i], (out_ch, DIL), jnp.float32) * scale
        wv_list.append(wv)
        wo_list.append(wo)
    if zero_init:
        w_end = jnp.zeros((2 * IN, SKP), jnp.float32)
    else:
        w_end = jax.random.normal(keys[-1], (2 * IN, SKP), jnp.float32) * scale
    return dilations, (w_start, wv_list, wo_list, w_end)


def to_kernel_params(torch_params, RES):
    w_start, wv_list, wo_list, w_end = torch_params
    depth = len(wo_list)
    ws_k = w_start.T                                                  # (IN, RES)
    # fused dilated-conv weight: rows ordered [tap0(x,y), tap1(x,y), ...]
    wv_f = jnp.stack([wv.transpose(2, 1, 0).reshape(-1, wv.shape[0])
                      for wv in wv_list])                             # (L, radix*(RES+AUX), 2*DIL)
    wo_k = []
    for i, wo in enumerate(wo_list):
        wt = wo.T                                                     # (DIL, out_ch)
        if i == depth - 1:
            # last layer has no residual output: pad residual columns with zeros
            wt = jnp.concatenate([jnp.zeros((wt.shape[0], RES), wt.dtype), wt], axis=1)
        wo_k.append(wt)
    wo_k = jnp.stack(wo_k)                                            # (L, DIL, RES+SKP)
    we_k = w_end.T                                                    # (SKP, 2*IN)
    return ws_k, wv_f, wo_k, we_k


# ----------------------------------------------------------------------------
# Pure-JAX reference mirroring the PyTorch module (NCT layout, f32 HIGHEST)
# ----------------------------------------------------------------------------
def wn_forward_ref(x, y, torch_params, dilations):
    w_start, wv_list, wo_list, w_end = torch_params
    RES = w_start.shape[0]
    IN = x.shape[1]
    T = x.shape[-1]
    hi = lax.Precision.HIGHEST

    def conv1x1(v, w):
        return jnp.einsum('oc,nct->not', w, v, precision=hi)

    h = conv1x1(x, w_start)
    cum = None
    L = len(dilations)
    for i, d in enumerate(dilations):
        xy = jnp.concatenate([h, y], axis=1)
        pad = jnp.pad(xy, ((0, 0), (0, 0), (d, d)))
        radix = wv_list[i].shape[-1]
        z2 = 0.
        for k in range(radix):
            z2 = z2 + jnp.einsum(
                'oc,nct->not', wv_list[i][:, :, k],
                lax.dynamic_slice_in_dim(pad, k * d, T, axis=2), precision=hi)
        DIL = z2.shape[1] // 2
        z = jnp.tanh(z2[:, :DIL]) * jax.nn.sigmoid(z2[:, DIL:])
        o = conv1x1(z, wo_list[i])
        if i < L - 1:
            h = h + o[:, :RES]
            skip = o[:, RES:]
        else:
            skip = o
        cum = skip if cum is None else cum + skip
    out = conv1x1(cum, w_end)
    return out[:, :IN], out[:, IN:]


# ----------------------------------------------------------------------------
if __name__ == "__main__":
    key = jax.random.PRNGKey(0)
    N, IN, AUX, T = 2, 4, 4, 64
    DIL, RES, SKP = 16, 16, 16
    depth, radix = 4, 3

    k_x, k_y, k_p = jax.random.split(key, 3)
    x = jax.random.normal(k_x, (N, IN, T), jnp.float32)
    y = jax.random.normal(k_y, (N, AUX, T), jnp.float32)

    # zero_init=False so the end conv produces a non-trivial output to verify.
    dilations, torch_params = init_params(k_p, IN, AUX, DIL, RES, SKP,
                                          depth, radix, zero_init=False)
    kernel_params = to_kernel_params(torch_params, RES)

    out_a, out_b = wn_forward_pallas(x, y, kernel_params, dilations)
    jax.block_until_ready((out_a, out_b))

    ref_a, ref_b = wn_forward_ref(x, y, torch_params, dilations)
    # bf16 matmul operands (f32 accumulation) -> loosened tolerance vs f32-HIGHEST ref.
    np.testing.assert_allclose(np.asarray(out_a), np.asarray(ref_a),
                               rtol=5e-2, atol=2e-2)
    np.testing.assert_allclose(np.asarray(out_b), np.asarray(ref_b),
                               rtol=5e-2, atol=2e-2)
    print("KERNEL_OK")
</pallas_src>

<mosaic_0001>
module attributes {stable_mosaic.version = 11 : i64} {
  func.func @kernel(%arg0: i32, %arg1: i32, %arg2: memref<4xi32, #tpu.memory_space<smem>>, %arg3: memref<128x4xf32, #tpu.memory_space<vmem>>, %arg4: memref<128x4xf32, #tpu.memory_space<vmem>>, %arg5: memref<4x16xbf16, #tpu.memory_space<vmem>>, %arg6: memref<1x60x32xbf16, #tpu.memory_space<vmem>>, %arg7: memref<1x16x32xbf16, #tpu.memory_space<vmem>>, %arg8: memref<16x8xbf16, #tpu.memory_space<vmem>>, %arg9: memref<128x8xf32, #tpu.memory_space<vmem>>, %arg10: memref<2x80x20xf32, #tpu.memory_space<vmem>>, %arg11: memref<128x16xf32, #tpu.memory_space<vmem>>) attributes {dimension_semantics = [#tpu.dimension_semantics<parallel>, #tpu.dimension_semantics<arbitrary>], iteration_bounds = array<i64: 1, 4>, scalar_prefetch = 1 : i64, scratch_operands = 2 : i64, tpu.core_type = #tpu.core_type<tc>, window_params = [{transform_indices = @transform_0, window_bounds = array<i64: 128, 4>}, {transform_indices = @transform_1, window_bounds = array<i64: 128, 4>}, {pipeline_mode = #tpu.pipeline_mode<synchronous>, transform_indices = @transform_2, window_bounds = array<i64: 4, 16>}, {transform_indices = @transform_3, window_bounds = array<i64: 1, 60, 32>}, {transform_indices = @transform_4, window_bounds = array<i64: 1, 16, 32>}, {pipeline_mode = #tpu.pipeline_mode<synchronous>, transform_indices = @transform_5, window_bounds = array<i64: 16, 8>}, {transform_indices = @transform_6, window_bounds = array<i64: 128, 8>}]} {
    %0 = arith.index_cast %arg1 : i32 to index
    %1 = memref.load %arg2[%0] : memref<4xi32, #tpu.memory_space<smem>>
    %c0_i32 = arith.constant 0 : i32
    %2 = arith.cmpi eq, %arg1, %c0_i32 : i32
    %3 = arith.extui %2 : i1 to i32
    %c0_i32_0 = arith.constant 0 : i32
    %4 = arith.cmpi ne, %3, %c0_i32_0 : i32
    scf.if %4 {
      %cst_42 = arith.constant 0.000000e+00 : f32
      %75 = vector.broadcast %cst_42 : f32 to vector<2x80x20xf32>
      %c0_43 = arith.constant 0 : index
      %c0_44 = arith.constant 0 : index
      %c0_45 = arith.constant 0 : index
      %76 = vector.load %arg10[%c0_43, %c0_44, %c0_45] : memref<2x80x20xf32, #tpu.memory_space<vmem>>, vector<2x80x20xf32>
      tpu.vector_store %arg10[%c0_43, %c0_44, %c0_45], %75 {strides = array<i32>} : memref<2x80x20xf32, #tpu.memory_space<vmem>>, vector<2x80x20xf32>,
      %cst_46 = arith.constant 0.000000e+00 : f32
      %77 = vector.broadcast %cst_46 : f32 to vector<128x16xf32>
      %c0_47 = arith.constant 0 : index
      %c0_48 = arith.constant 0 : index
      %78 = vector.load %arg11[%c0_47, %c0_48] : memref<128x16xf32, #tpu.memory_space<vmem>>, vector<128x16xf32>
      tpu.vector_store %arg11[%c0_47, %c0_48], %77 {strides = array<i32>} : memref<128x16xf32, #tpu.memory_space<vmem>>, vector<128x16xf32>,
      %c0_49 = arith.constant 0 : index
      %c0_50 = arith.constant 0 : index
      %79 = vector.load %arg3[%c0_49, %c0_50] : memref<128x4xf32, #tpu.memory_space<vmem>>, vector<128x4xf32>
      %80 = arith.truncf %79 : vector<128x4xf32> to vector<128x4xbf16>
      %c0_51 = arith.constant 0 : index
      %c0_52 = arith.constant 0 : index
      %81 = vector.load %arg5[%c0_51, %c0_52] : memref<4x16xbf16, #tpu.memory_space<vmem>>, vector<4x16xbf16>
      %cst_53 = arith.constant dense<0.000000e+00> : vector<128x16xf32>
      %82 = tpu.matmul %80, %81, %cst_53 {dimension_numbers = #tpu.dot_dimension_numbers<[1], [0], [0], [1], [0, 0, 1, 1], [], []>} : vector<128x4xbf16>, vector<4x16xbf16>, vector<128x16xf32> -> vector<128x16xf32>
      %83 = vector.extract_strided_slice %82 {offsets = [0, 0], sizes = [64, 16], strides = [1, 1]} : vector<128x16xf32> to vector<64x16xf32>
      %c0_54 = arith.constant 0 : index
      %c8_55 = arith.constant 8 : index
      %c0_56 = arith.constant 0 : index
      %84 = vector.load %arg10[%c0_54, %c8_55, %c0_56] : memref<2x80x20xf32, #tpu.memory_space<vmem>>, vector<1x64x16xf32>
      %85 = vector.shape_cast %84 : vector<1x64x16xf32> to vector<64x16xf32>
      %86 = vector.shape_cast %83 : vector<64x16xf32> to vector<1x64x16xf32>
      tpu.vector_store %arg10[%c0_54, %c8_55, %c0_56], %86 {strides = array<i32>} : memref<2x80x20xf32, #tpu.memory_space<vmem>>, vector<1x64x16xf32>,
      %c0_57 = arith.constant 0 : index
      %c0_58 = arith.constant 0 : index
      %87 = vector.load %arg4[%c0_57, %c0_58] : memref<128x4xf32, #tpu.memory_space<vmem>>, vector<64x4xf32>
      %c0_59 = arith.constant 0 : index
      %c8_60 = arith.constant 8 : index
      %c16 = arith.constant 16 : index
      %88 = vector.load %arg10[%c0_59, %c8_60, %c16] : memref<2x80x20xf32, #tpu.memory_space<vmem>>, vector<1x64x4xf32>
      %89 = vector.shape_cast %88 : vector<1x64x4xf32> to vector<64x4xf32>
      %90 = vector.shape_cast %87 : vector<64x4xf32> to vector<1x64x4xf32>
      tpu.vector_store %arg10[%c0_59, %c8_60, %c16], %90 {strides = array<i32>} : memref<2x80x20xf32, #tpu.memory_space<vmem>>, vector<1x64x4xf32>,
      %91 = vector.extract_strided_slice %82 {offsets = [64, 0], sizes = [64, 16], strides = [1, 1]} : vector<128x16xf32> to vector<64x16xf32>
      %c1_61 = arith.constant 1 : index
      %c8_62 = arith.constant 8 : index
      %c0_63 = arith.constant 0 : index
      %92 = vector.load %arg10[%c1_61, %c8_62, %c0_63] : memref<2x80x20xf32, #tpu.memory_space<vmem>>, vector<1x64x16xf32>
      %93 = vector.shape_cast %92 : vector<1x64x16xf32> to vector<64x16xf32>
      %94 = vector.shape_cast %91 : vector<64x16xf32> to vector<1x64x16xf32>
      tpu.vector_store %arg10[%c1_61, %c8_62, %c0_63], %94 {strides = array<i32>} : memref<2x80x20xf32, #tpu.memory_space<vmem>>, vector<1x64x16xf32>,
      %c64 = arith.constant 64 : index
      %c0_64 = arith.constant 0 : index
      %95 = vector.load %arg4[%c64, %c0_64] : memref<128x4xf32, #tpu.memory_space<vmem>>, vector<64x4xf32>
      %c1_65 = arith.constant 1 : index
      %c8_66 = arith.constant 8 : index
      %c16_67 = arith.constant 16 : index
      %96 = vector.load %arg10[%c1_65, %c8_66, %c16_67] : memref<2x80x20xf32, #tpu.memory_space<vmem>>, vector<1x64x4xf32>
      %97 = vector.shape_cast %96 : vector<1x64x4xf32> to vector<64x4xf32>
      %98 = vector.shape_cast %95 : vector<64x4xf32> to vector<1x64x4xf32>
      tpu.vector_store %arg10[%c1_65, %c8_66, %c16_67], %98 {strides = array<i32>} : memref<2x80x20xf32, #tpu.memory_space<vmem>>, vector<1x64x4xf32>,
    } else {
    }
    %c-1_i32 = arith.constant -1 : i32
    %5 = arith.muli %c-1_i32, %1 : i32
    %c8_i32 = arith.constant 8 : i32
    %6 = arith.addi %c8_i32, %5 : i32
    %c0 = arith.constant 0 : index
    %7 = arith.index_cast %6 : i32 to index
    %c0_1 = arith.constant 0 : index
    %8 = vector.load %arg10[%c0, %7, %c0_1] : memref<2x80x20xf32, #tpu.memory_space<vmem>>, vector<1x64x20xf32>
    %9 = vector.shape_cast %8 : vector<1x64x20xf32> to vector<64x20xf32>
    %10 = arith.truncf %9 : vector<64x20xf32> to vector<64x20xbf16>
    %c0_2 = arith.constant 0 : index
    %c8 = arith.constant 8 : index
    %c0_3 = arith.constant 0 : index
    %11 = vector.load %arg10[%c0_2, %c8, %c0_3] : memref<2x80x20xf32, #tpu.memory_space<vmem>>, vector<1x64x20xf32>
    %12 = vector.shape_cast %11 : vector<1x64x20xf32> to vector<64x20xf32>
    %13 = arith.truncf %12 : vector<64x20xf32> to vector<64x20xbf16>
    %c1_i32 = arith.constant 1 : i32
    %14 = arith.muli %c1_i32, %1 : i32
    %c8_i32_4 = arith.constant 8 : i32
    %15 = arith.addi %c8_i32_4, %14 : i32
    %c0_5 = arith.constant 0 : index
    %16 = arith.index_cast %15 : i32 to index
    %c0_6 = arith.constant 0 : index
    %17 = vector.load %arg10[%c0_5, %16, %c0_6] : memref<2x80x20xf32, #tpu.memory_space<vmem>>, vector<1x64x20xf32>
    %18 = vector.shape_cast %17 : vector<1x64x20xf32> to vector<64x20xf32>
    %19 = arith.truncf %18 : vector<64x20xf32> to vector<64x20xbf16>
    %20 = tpu.concatenate %10, %13, %19 in 1 : vector<64x20xbf16>, vector<64x20xbf16>, vector<64x20xbf16> -> vector<64x60xbf16>
    %c-1_i32_7 = arith.constant -1 : i32
    %21 = arith.muli %c-1_i32_7, %1 : i32
    %c8_i32_8 = arith.constant 8 : i32
    %22 = arith.addi %c8_i32_8, %21 : i32
    %c1 = arith.constant 1 : index
    %23 = arith.index_cast %22 : i32 to index
    %c0_9 = arith.constant 0 : index
    %24 = vector.load %arg10[%c1, %23, %c0_9] : memref<2x80x20xf32, #tpu.memory_space<vmem>>, vector<1x64x20xf32>
    %25 = vector.shape_cast %24 : vector<1x64x20xf32> to vector<64x20xf32>
    %26 = arith.truncf %25 : vector<64x20xf32> to vector<64x20xbf16>
    %c1_10 = arith.constant 1 : index
    %c8_11 = arith.constant 8 : index
    %c0_12 = arith.constant 0 : index
    %27 = vector.load %arg10[%c1_10, %c8_11, %c0_12] : memref<2x80x20xf32, #tpu.memory_space<vmem>>, vector<1x64x20xf32>
    %28 = vector.shape_cast %27 : vector<1x64x20xf32> to vector<64x20xf32>
    %29 = arith.truncf %28 : vector<64x20xf32> to vector<64x20xbf16>
    %c1_i32_13 = arith.constant 1 : i32
    %30 = arith.muli %c1_i32_13, %1 : i32
    %c8_i32_14 = arith.constant 8 : i32
    %31 = arith.addi %c8_i32_14, %30 : i32
    %c1_15 = arith.constant 1 : index
    %32 = arith.index_cast %31 : i32 to index
    %c0_16 = arith.constant 0 : index
    %33 = vector.load %arg10[%c1_15, %32, %c0_16] : memref<2x80x20xf32, #tpu.memory_space<vmem>>, vector<1x64x20xf32>
    %34 = vector.shape_cast %33 : vector<1x64x20xf32> to vector<64x20xf32>
    %35 = arith.truncf %34 : vector<64x20xf32> to vector<64x20xbf16>
    %36 = tpu.concatenate %26, %29, %35 in 1 : vector<64x20xbf16>, vector<64x20xbf16>, vector<64x20xbf16> -> vector<64x60xbf16>
    %37 = tpu.concatenate %20, %36 in 0 : vector<64x60xbf16>, vector<64x60xbf16> -> vector<128x60xbf16>
    %c0_17 = arith.constant 0 : index
    %c0_18 = arith.constant 0 : index
    %c0_19 = arith.constant 0 : index
    %38 = vector.load %arg6[%c0_17, %c0_18, %c0_19] : memref<1x60x32xbf16, #tpu.memory_space<vmem>>, vector<1x60x32xbf16>
    %39 = vector.shape_cast %38 : vector<1x60x32xbf16> to vector<60x32xbf16>
    %cst = arith.constant dense<0.000000e+00> : vector<128x32xf32>
    %40 = tpu.matmul %37, %39, %cst {dimension_numbers = #tpu.dot_dimension_numbers<[1], [0], [0], [1], [0, 0, 1, 1], [], []>} : vector<128x60xbf16>, vector<60x32xbf16>, vector<128x32xf32> -> vector<128x32xf32>
    %41 = vector.extract_strided_slice %40 {offsets = [0, 0], sizes = [128, 16], strides = [1, 1]} : vector<128x32xf32> to vector<128x16xf32>
    %42 = math.tanh %41 : vector<128x16xf32>
    %43 = vector.extract_strided_slice %40 {offsets = [0, 16], sizes = [128, 16], strides = [1, 1]} : vector<128x32xf32> to vector<128x16xf32>
    %44 = arith.negf %43 : vector<128x16xf32>
    %45 = math.exp %44 : vector<128x16xf32>
    %cst_20 = arith.constant 1.000000e+00 : f32
    %46 = vector.broadcast %cst_20 : f32 to vector<128x16xf32>
    %47 = arith.addf %46, %45 : vector<128x16xf32>
    %48 = arith.divf %46, %47 : vector<128x16xf32>
    %49 = arith.mulf %42, %48 : vector<128x16xf32>
    %50 = arith.truncf %49 : vector<128x16xf32> to vector<128x16xbf16>
    %c0_21 = arith.constant 0 : index
    %c0_22 = arith.constant 0 : index
    %c0_23 = arith.constant 0 : index
    %51 = vector.load %arg7[%c0_21, %c0_22, %c0_23] : memref<1x16x32xbf16, #tpu.memory_space<vmem>>, vector<1x16x32xbf16>
    %52 = vector.shape_cast %51 : vector<1x16x32xbf16> to vector<16x32xbf16>
    %cst_24 = arith.constant dense<0.000000e+00> : vector<128x32xf32>
    %53 = tpu.matmul %50, %52, %cst_24 {dimension_numbers = #tpu.dot_dimension_numbers<[1], [0], [0], [1], [0, 0, 1, 1], [], []>} : vector<128x16xbf16>, vector<16x32xbf16>, vector<128x32xf32> -> vector<128x32xf32>
    %c0_25 = arith.constant 0 : index
    %c8_26 = arith.constant 8 : index
    %c0_27 = arith.constant 0 : index
    %54 = vector.load %arg10[%c0_25, %c8_26, %c0_27] : memref<2x80x20xf32, #tpu.memory_space<vmem>>, vector<1x64x16xf32>
    %55 = vector.shape_cast %54 : vector<1x64x16xf32> to vector<64x16xf32>
    %56 = vector.extract_strided_slice %53 {offsets = [0, 0], sizes = [64, 16], strides = [1, 1]} : vector<128x32xf32> to vector<64x16xf32>
    %57 = arith.addf %55, %56 : vector<64x16xf32>
    %c0_28 = arith.constant 0 : index
    %c8_29 = arith.constant 8 : index
    %c0_30 = arith.constant 0 : index
    %58 = vector.load %arg10[%c0_28, %c8_29, %c0_30] : memref<2x80x20xf32, #tpu.memory_space<vmem>>, vector<1x64x16xf32>
    %59 = vector.shape_cast %58 : vector<1x64x16xf32> to vector<64x16xf32>
    %60 = vector.shape_cast %57 : vector<64x16xf32> to vector<1x64x16xf32>
    tpu.vector_store %arg10[%c0_28, %c8_29, %c0_30], %60 {strides = array<i32>} : memref<2x80x20xf32, #tpu.memory_space<vmem>>, vector<1x64x16xf32>,
    %c1_31 = arith.constant 1 : index
    %c8_32 = arith.constant 8 : index
    %c0_33 = arith.constant 0 : index
    %61 = vector.load %arg10[%c1_31, %c8_32, %c0_33] : memref<2x80x20xf32, #tpu.memory_space<vmem>>, vector<1x64x16xf32>
    %62 = vector.shape_cast %61 : vector<1x64x16xf32> to vector<64x16xf32>
    %63 = vector.extract_strided_slice %53 {offsets = [64, 0], sizes = [64, 16], strides = [1, 1]} : vector<128x32xf32> to vector<64x16xf32>
    %64 = arith.addf %62, %63 : vector<64x16xf32>
    %c1_34 = arith.constant 1 : index
    %c8_35 = arith.constant 8 : index
    %c0_36 = arith.constant 0 : index
    %65 = vector.load %arg10[%c1_34, %c8_35, %c0_36] : memref<2x80x20xf32, #tpu.memory_space<vmem>>, vector<1x64x16xf32>
    %66 = vector.shape_cast %65 : vector<1x64x16xf32> to vector<64x16xf32>
    %67 = vector.shape_cast %64 : vector<64x16xf32> to vector<1x64x16xf32>
    tpu.vector_store %arg10[%c1_34, %c8_35, %c0_36], %67 {strides = array<i32>} : memref<2x80x20xf32, #tpu.memory_space<vmem>>, vector<1x64x16xf32>,
    %c0_37 = arith.constant 0 : index
    %c0_38 = arith.constant 0 : index
    %68 = vector.load %arg11[%c0_37, %c0_38] : memref<128x16xf32, #tpu.memory_space<vmem>>, vector<128x16xf32>
    %69 = vector.extract_strided_slice %53 {offsets = [0, 16], sizes = [128, 16], strides = [1, 1]} : vector<128x32xf32> to vector<128x16xf32>
    %70 = arith.addf %68, %69 : vector<128x16xf32>
    %c0_39 = arith.constant 0 : index
    %c0_40 = arith.constant 0 : index
    %71 = vector.load %arg11[%c0_39, %c0_40] : memref<128x16xf32, #tpu.memory_space<vmem>>, vector<128x16xf32>
    tpu.vector_store %arg11[%c0_39, %c0_40], %70 {strides = array<i32>} : memref<128x16xf32, #tpu.memory_space<vmem>>, vector<128x16xf32>,
    %c3_i32 = arith.constant 3 : i32
    %72 = arith.cmpi eq, %arg1, %c3_i32 : i32
    %73 = arith.extui %72 : i1 to i32
    %c0_i32_41 = arith.constant 0 : i32
    %74 = arith.cmpi ne, %73, %c0_i32_41 : i32
    scf.if %74 {
      %c0_42 = arith.constant 0 : index
      %c0_43 = arith.constant 0 : index
      %75 = vector.load %arg11[%c0_42, %c0_43] : memref<128x16xf32, #tpu.memory_space<vmem>>, vector<128x16xf32>
      %76 = arith.truncf %75 : vector<128x16xf32> to vector<128x16xbf16>
      %c0_44 = arith.constant 0 : index
      %c0_45 = arith.constant 0 : index
      %77 = vector.load %arg8[%c0_44, %c0_45] : memref<16x8xbf16, #tpu.memory_space<vmem>>, vector<16x8xbf16>
      %cst_46 = arith.constant dense<0.000000e+00> : vector<128x8xf32>
      %78 = tpu.matmul %76, %77, %cst_46 {dimension_numbers = #tpu.dot_dimension_numbers<[1], [0], [0], [1], [0, 0, 1, 1], [], []>} : vector<128x16xbf16>, vector<16x8xbf16>, vector<128x8xf32> -> vector<128x8xf32>
      %c0_47 = arith.constant 0 : index
      %c0_48 = arith.constant 0 : index
      %79 = vector.load %arg9[%c0_47, %c0_48] : memref<128x8xf32, #tpu.memory_space<vmem>>, vector<128x8xf32>
      tpu.vector_store %arg9[%c0_47, %c0_48], %78 {strides = array<i32>} : memref<128x8xf32, #tpu.memory_space<vmem>>, vector<128x8xf32>,
    } else {
    }
    return
  }
  func.func @transform_0(%arg0: i32, %arg1: i32, %arg2: memref<4xi32, #tpu.memory_space<smem>>) -> (i32, i32) {
    %c0_i32 = arith.constant 0 : i32
    %c0_i32_0 = arith.constant 0 : i32
    return %arg0, %c0_i32 : i32, i32
  }
  func.func @transform_1(%arg0: i32, %arg1: i32, %arg2: memref<4xi32, #tpu.memory_space<smem>>) -> (i32, i32) {
    %c0_i32 = arith.constant 0 : i32
    %c0_i32_0 = arith.constant 0 : i32
    return %arg0, %c0_i32 : i32, i32
  }
  func.func @transform_2(%arg0: i32, %arg1: i32, %arg2: memref<4xi32, #tpu.memory_space<smem>>) -> (i32, i32) {
    %c0_i32 = arith.constant 0 : i32
    %c0_i32_0 = arith.constant 0 : i32
    %c0_i32_1 = arith.constant 0 : i32
    return %c0_i32, %c0_i32_0 : i32, i32
  }
  func.func @transform_3(%arg0: i32, %arg1: i32, %arg2: memref<4xi32, #tpu.memory_space<smem>>) -> (i32, i32, i32) {
    %c0_i32 = arith.constant 0 : i32
    %c0_i32_0 = arith.constant 0 : i32
    %c0_i32_1 = arith.constant 0 : i32
    return %arg1, %c0_i32, %c0_i32_0 : i32, i32, i32
  }
  func.func @transform_4(%arg0: i32, %arg1: i32, %arg2: memref<4xi32, #tpu.memory_space<smem>>) -> (i32, i32, i32) {
    %c0_i32 = arith.constant 0 : i32
    %c0_i32_0 = arith.constant 0 : i32
    %c0_i32_1 = arith.constant 0 : i32
    return %arg1, %c0_i32, %c0_i32_0 : i32, i32, i32
  }
  func.func @transform_5(%arg0: i32, %arg1: i32, %arg2: memref<4xi32, #tpu.memory_space<smem>>) -> (i32, i32) {
    %c0_i32 = arith.constant 0 : i32
    %c0_i32_0 = arith.constant 0 : i32
    %c0_i32_1 = arith.constant 0 : i32
    return %c0_i32, %c0_i32_0 : i32, i32
  }
  func.func @transform_6(%arg0: i32, %arg1: i32, %arg2: memref<4xi32, #tpu.memory_space<smem>>) -> (i32, i32) {
    %c0_i32 = arith.constant 0 : i32
    %c0_i32_0 = arith.constant 0 : i32
    return %arg0, %c0_i32 : i32, i32
  }
}

</mosaic_0001>

<llo_original>
// kernel: tpu_custom_call.1
$region0: #{tpu_custom_call.1}
  #allocation0 [shape = 'u32[]', space=smem, size = 0x4, offset = 0x4, fixed_abs, tag = 'smem constant byte address 0x4 - core index']
  #allocation1 [shape = 'u32[72,128]{1,0:T(1,128)}', space=vmem, size = 0x9000, scoped, tag = 'internal scratch']
  #allocation2 [shape = 'f32[2,80,20]{2,1,0:T(8,128)}', space=vmem, size = 0x14000, scoped, tag = 'scratch operand']
  #allocation3 [shape = 'f32[128,16]{1,0:T(8,128)}', space=vmem, size = 0x10000, scoped, tag = 'scratch operand']
  #allocation4 [shape = 's32[1]{0}', space=sflag, size = 0x4, scoped, tag = 'scoped memory for tpu_custom_call.1']
  #allocation5 [shape = 'u8[512]{0}', space=smem, size = 0x200, scoped, tag = 'prefetched SMEM operand 0']
  %s0 = inlined_call_operand.vmem [shape: s32[4], index: 0, kind: input, shape index: {}]
  %s1 = inlined_call_operand.vmem [shape: f32[128,4], index: 1, kind: input, shape index: {}]
  %s2 = inlined_call_operand.vmem [shape: f32[128,4], index: 2, kind: input, shape index: {}]
  %s3 = inlined_call_operand.vmem [shape: bf16[4,16], index: 3, kind: input, shape index: {}]
  %s4 = inlined_call_operand.vmem [shape: bf16[4,60,32], index: 4, kind: input, shape index: {}]
  %s5 = inlined_call_operand.vmem [shape: bf16[4,16,32], index: 5, kind: input, shape index: {}]
  %s6 = inlined_call_operand.vmem [shape: bf16[16,8], index: 6, kind: input, shape index: {}]
  %s7 = inlined_call_operand.vmem [shape: f32[128,8], index: 7, kind: output, shape index: {}]
  %s8 = sld [smem:[#allocation0]]
  $region65: #{tpu_custom_call.1} parent=0
    _
  %s10 = ssub.s32 1, %s8
  %s11 = scalar_select 0, %s10, %s8
  %s13 = sshll.u32 %s0, 4
  %s14 = int_to_ptr.vmem [resolvable:$true] %s13
  %16 = dma.vmem_to_smem %s14, 16, [#allocation5], [#allocation4]
  %18 = dma.done [#allocation4], 16
  %19 = sfence
  loop: start=0, step=1, limit=6
  $region2: #{tpu_custom_call.1} parent=0 // loop_pre_header
    _
  $region3: #{tpu_custom_call.1} parent=0 // loop_header
    %s21 = sphi 0, %s25
    %p22 = scmp.ge.s32.totalorder %s21, 6
    %s28 = sphi 0, %s40
    %s29 = sphi 0, %s36
    %s30 = sphi 0, %s28
    %s31 = sphi 0, %s29
    %s32 = sphi 0, %s30
    %s33 = sphi 0, %s31
    %s43 = sphi 0, %s45
    %s46 = sphi 0, %s43
    %s47 = sphi 0, %s46
    %s63 = sphi 0, %s47
    %s69 = sphi 0, %s71
    %s72 = sphi 0, %s69
    %s73 = sphi 0, %s72
    %s89 = sphi 0, %s73
    %s93 = sphi 0, %s93
    %s95 = sphi 0, %s93
    %s96 = sphi 0, %s95
    %s110 = sphi 0, %s96
    %s116 = sphi 0, %s118
    %s119 = sphi 0, %s116
    %s120 = sphi 0, %s119
    %s136 = sphi 0, %s120
    %s142 = sphi 0, %s144
    %s145 = sphi 0, %s142
    %s146 = sphi 0, %s145
    %s162 = sphi 0, %s146
    %s166 = sphi 0, %s166
    %s168 = sphi 0, %s166
    %s169 = sphi 0, %s168
    %s183 = sphi 0, %s169
    %s189 = sphi 0, %s191
    %s192 = sphi 0, %s189
    %s193 = sphi 0, %s192
    %s209 = sphi 0, %s193
  $region4: #{tpu_custom_call.1} parent=0 // loop_header_branch
    %24 = sbr.rel (%p22) target = $region8
  $region5: #{tpu_custom_call.1} parent=0 // loop_body
    %s26 = ssub.s32 %s21, 1
    %s27 = ssub.s32 %s21, 2
    %s34 = sadd.s32 1, %s29
    %p35 = scmp.ge.s32.totalorder %s34, 4
    %s36 = scalar_select %p35, 0, %s34
    %s37 = sadd.s32 1, %s28
    %s38 = scalar_select %p35, %s37, %s28
    %p39 = scmp.ge.s32.totalorder %s38, 1
    %s40 = scalar_select %p39, 0, %s38
    %s41 = ssub.s32 %s28, %s40
    %p42 = scmp.eq.s32.totalorder %s41, 0
    %s44 = sadd.s32 %s43, 1
    %s45 = scalar_select %p42, %s43, %s44
    %p48 = pneg %p42
    %p49 = scmp.eq.s32.totalorder %s21, 3
    %p50 = por %p48, %p49
    %p51 = scmp.ne.s32.totalorder %s43, %s46
    %p52 = scmp.eq.s32.totalorder %s21, 0
    %p53 = por %p51, %p52
    %p54 = scmp.ne.s32.totalorder %s43, %s46
    %p55 = scmp.eq.s32.totalorder %s26, 3
    %p56 = por %p54, %p55
    %p57 = scmp.ne.s32.totalorder %s46, %s47
    %p58 = scmp.eq.s32.totalorder %s26, 0
    %p59 = por %p57, %p58
    %p60 = scmp.ne.s32.totalorder %s46, %s47
    %p61 = scmp.eq.s32.totalorder %s27, 3
    %p62 = por %p60, %p61
    %p64 = scmp.ne.s32.totalorder %s47, %s63
    %p65 = scmp.eq.s32.totalorder %s27, 0
    %p66 = por %p64, %p65
    %s67 = ssub.s32 %s28, %s40
    %p68 = scmp.eq.s32.totalorder %s67, 0
    %s70 = sadd.s32 %s69, 1
    %s71 = scalar_select %p68, %s69, %s70
    %p74 = pneg %p68
    %p75 = scmp.eq.s32.totalorder %s21, 3
    %p76 = por %p74, %p75
    %p77 = scmp.ne.s32.totalorder %s69, %s72
    %p78 = scmp.eq.s32.totalorder %s21, 0
    %p79 = por %p77, %p78
    %p80 = scmp.ne.s32.totalorder %s69, %s72
    %p81 = scmp.eq.s32.totalorder %s26, 3
    %p82 = por %p80, %p81
    %p83 = scmp.ne.s32.totalorder %s72, %s73
    %p84 = scmp.eq.s32.totalorder %s26, 0
    %p85 = por %p83, %p84
    %p86 = scmp.ne.s32.totalorder %s72, %s73
    %p87 = scmp.eq.s32.totalorder %s27, 3
    %p88 = por %p86, %p87
    %p90 = scmp.ne.s32.totalorder %s73, %s89
    %p91 = scmp.eq.s32.totalorder %s27, 0
    %p92 = por %p90, %p91
    %s94 = sadd.s32 %s93, 1
    %p97 = scmp.eq.s32.totalorder %s21, 3
    %p98 = scmp.ne.s32.totalorder %s93, %s95
    %p99 = scmp.eq.s32.totalorder %s21, 0
    %p100 = por %p98, %p99
    %p101 = scmp.ne.s32.totalorder %s93, %s95
    %p102 = scmp.eq.s32.totalorder %s26, 3
    %p103 = por %p101, %p102
    %p104 = scmp.ne.s32.totalorder %s95, %s96
    %p105 = scmp.eq.s32.totalorder %s26, 0
    %p106 = por %p104, %p105
    %p107 = scmp.ne.s32.totalorder %s95, %s96
    %p108 = scmp.eq.s32.totalorder %s27, 3
    %p109 = por %p107, %p108
    %p111 = scmp.ne.s32.totalorder %s96, %s110
    %p112 = scmp.eq.s32.totalorder %s27, 0
    %p113 = por %p111, %p112
    %s114 = ssub.s32 %s29, %s36
    %p115 = scmp.eq.s32.totalorder %s114, 0
    %s117 = sadd.s32 %s116, 1
    %s118 = scalar_select %p115, %s116, %s117
    %p121 = pneg %p115
    %p122 = scmp.eq.s32.totalorder %s21, 3
    %p123 = por %p121, %p122
    %p124 = scmp.ne.s32.totalorder %s116, %s119
    %p125 = scmp.eq.s32.totalorder %s21, 0
    %p126 = por %p124, %p125
    %p127 = scmp.ne.s32.totalorder %s116, %s119
    %p128 = scmp.eq.s32.totalorder %s26, 3
    %p129 = por %p127, %p128
    %p130 = scmp.ne.s32.totalorder %s119, %s120
    %p131 = scmp.eq.s32.totalorder %s26, 0
    %p132 = por %p130, %p131
    %p133 = scmp.ne.s32.totalorder %s119, %s120
    %p134 = scmp.eq.s32.totalorder %s27, 3
    %p135 = por %p133, %p134
    %p137 = scmp.ne.s32.totalorder %s120, %s136
    %p138 = scmp.eq.s32.totalorder %s27, 0
    %p139 = por %p137, %p138
    %s140 = ssub.s32 %s29, %s36
    %p141 = scmp.eq.s32.totalorder %s140, 0
    %s143 = sadd.s32 %s142, 1
    %s144 = scalar_select %p141, %s142, %s143
    %p147 = pneg %p141
    %p148 = scmp.eq.s32.totalorder %s21, 3
    %p149 = por %p147, %p148
    %p150 = scmp.ne.s32.totalorder %s142, %s145
    %p151 = scmp.eq.s32.totalorder %s21, 0
    %p152 = por %p150, %p151
    %p153 = scmp.ne.s32.totalorder %s142, %s145
    %p154 = scmp.eq.s32.totalorder %s26, 3
    %p155 = por %p153, %p154
    %p156 = scmp.ne.s32.totalorder %s145, %s146
    %p157 = scmp.eq.s32.totalorder %s26, 0
    %p158 = por %p156, %p157
    %p159 = scmp.ne.s32.totalorder %s145, %s146
    %p160 = scmp.eq.s32.totalorder %s27, 3
    %p161 = por %p159, %p160
    %p163 = scmp.ne.s32.totalorder %s146, %s162
    %p164 = scmp.eq.s32.totalorder %s27, 0
    %p165 = por %p163, %p164
    %s167 = sadd.s32 %s166, 1
    %p170 = scmp.eq.s32.totalorder %s21, 3
    %p171 = scmp.ne.s32.totalorder %s166, %s168
    %p172 = scmp.eq.s32.totalorder %s21, 0
    %p173 = por %p171, %p172
    %p174 = scmp.ne.s32.totalorder %s166, %s168
    %p175 = scmp.eq.s32.totalorder %s26, 3
    %p176 = por %p174, %p175
    %p177 = scmp.ne.s32.totalorder %s168, %s169
    %p178 = scmp.eq.s32.totalorder %s26, 0
    %p179 = por %p177, %p178
    %p180 = scmp.ne.s32.totalorder %s168, %s169
    %p181 = scmp.eq.s32.totalorder %s27, 3
    %p182 = por %p180, %p181
    %p184 = scmp.ne.s32.totalorder %s169, %s183
    %p185 = scmp.eq.s32.totalorder %s27, 0
    %p186 = por %p184, %p185
    %s187 = ssub.s32 %s28, %s40
    %p188 = scmp.eq.s32.totalorder %s187, 0
    %s190 = sadd.s32 %s189, 1
    %s191 = scalar_select %p188, %s189, %s190
    %p194 = pneg %p188
    %p195 = scmp.eq.s32.totalorder %s21, 3
    %p196 = por %p194, %p195
    %p197 = scmp.ne.s32.totalorder %s189, %s192
    %p198 = scmp.eq.s32.totalorder %s21, 0
    %p199 = por %p197, %p198
    %p200 = scmp.ne.s32.totalorder %s189, %s192
    %p201 = scmp.eq.s32.totalorder %s26, 3
    %p202 = por %p200, %p201
    %p203 = scmp.ne.s32.totalorder %s192, %s193
    %p204 = scmp.eq.s32.totalorder %s26, 0
    %p205 = por %p203, %p204
    %p206 = scmp.ne.s32.totalorder %s192, %s193
    %p207 = scmp.eq.s32.totalorder %s27, 3
    %p208 = por %p206, %p207
    %p210 = scmp.ne.s32.totalorder %s193, %s209
    %p211 = scmp.eq.s32.totalorder %s27, 0
    %p212 = por %p210, %p211
    %p213 = scmp.le.s32.totalorder 1, %s21
    %p214 = scmp.lt.s32.totalorder %s21, 5
    %p215 = pnand %p213, %p214
    %p216 = pneg %p215
    // Predicated region
    $region9: #{tpu_custom_call.1} parent=5 // pred_check
      _
    $region10: #{tpu_custom_call.1} parent=5 // pred_check_branch
      %218 = sbr.rel (%p215) target = $region12
    $region11: #{tpu_custom_call.1} parent=5 // pred_region
      %s219 = ssub.s32 %s21, 1
      // Predicated region
      $region13: #{tpu_custom_call.1} parent=11 // pred_check
        %p220 = pneg %p59
      $region14: #{tpu_custom_call.1} parent=11 // pred_check_branch
        %222 = sbr.rel (%p220) target = $region16
      $region15: #{tpu_custom_call.1} parent=11 // pred_region
        %s223 = smul.u32 16, %s30
        %p224 = scmp.lt.s32.totalorder %s223, 15
        %s225 = scalar_select %p224, %s223, 15
        %s226 = smul.addr %s225, 8
        %s227 = scalar_lea.vmem %s1, %s226
        %s228 = smul.u32 16, %s30
      $region16: #{tpu_custom_call.1} parent=11 // pred_fallthru
        _
      // Predicated region
      $region17: #{tpu_custom_call.1} parent=11 // pred_check
        %p229 = pneg %p85
      $region18: #{tpu_custom_call.1} parent=11 // pred_check_branch
        %231 = sbr.rel (%p229) target = $region20
      $region19: #{tpu_custom_call.1} parent=11 // pred_region
        %s232 = smul.u32 16, %s30
        %p233 = scmp.lt.s32.totalorder %s232, 15
        %s234 = scalar_select %p233, %s232, 15
        %s235 = smul.addr %s234, 8
        %s236 = scalar_lea.vmem %s2, %s235
        %s237 = smul.u32 16, %s30
      $region20: #{tpu_custom_call.1} parent=11 // pred_fallthru
        _
      // Predicated region
      $region21: #{tpu_custom_call.1} parent=11 // pred_check
        %p238 = pneg %p106
      $region22: #{tpu_custom_call.1} parent=11 // pred_check_branch
        %240 = sbr.rel (%p238) target = $region24
      $region23: #{tpu_custom_call.1} parent=11 // pred_region
        _
      $region24: #{tpu_custom_call.1} parent=11 // pred_fallthru
        _
      // Predicated region
      $region25: #{tpu_custom_call.1} parent=11 // pred_check
        %p241 = pneg %p179
      $region26: #{tpu_custom_call.1} parent=11 // pred_check_branch
        %243 = sbr.rel (%p241) target = $region28
      $region27: #{tpu_custom_call.1} parent=11 // pred_region
        _
      $region28: #{tpu_custom_call.1} parent=11 // pred_fallthru
        _
    $region12: #{tpu_custom_call.1} parent=5 // pred_fallthru
      _
    %p244 = scmp.lt.s32.totalorder %s21, 4
    // Predicated region
    $region29: #{tpu_custom_call.1} parent=5 // pred_check
      %p245 = pneg %p244
    $region30: #{tpu_custom_call.1} parent=5 // pred_check_branch
      %247 = sbr.rel (%p245) target = $region32
    $region31: #{tpu_custom_call.1} parent=5 // pred_region
      // Predicated region
      $region33: #{tpu_custom_call.1} parent=31 // pred_check
        %p248 = pneg %p126
      $region34: #{tpu_custom_call.1} parent=31 // pred_check_branch
        %250 = sbr.rel (%p248) target = $region36
      $region35: #{tpu_custom_call.1} parent=31 // pred_region
        %p251 = scmp.lt.s32.totalorder %s29, 3
        %s252 = scalar_select %p251, %s29, 3
        %s253 = smul.addr %s252, 8
        %s254 = smul.addr %s253, 4
        %s255 = scalar_lea.vmem %s4, %s254
      $region36: #{tpu_custom_call.1} parent=31 // pred_fallthru
        _
      // Predicated region
      $region37: #{tpu_custom_call.1} parent=31 // pred_check
        %p256 = pneg %p152
      $region38: #{tpu_custom_call.1} parent=31 // pred_check_branch
        %258 = sbr.rel (%p256) target = $region40
      $region39: #{tpu_custom_call.1} parent=31 // pred_region
        %p259 = scmp.lt.s32.totalorder %s29, 3
        %s260 = scalar_select %p259, %s29, 3
        %s261 = smul.addr %s260, 2
        %s262 = smul.addr %s261, 4
        %s263 = scalar_lea.vmem %s5, %s262
      $region40: #{tpu_custom_call.1} parent=31 // pred_fallthru
        _
    $region32: #{tpu_custom_call.1} parent=5 // pred_fallthru
      _
    %p264 = scmp.le.s32.totalorder 1, %s21
    %p265 = scmp.lt.s32.totalorder %s21, 5
    %p266 = pnand %p264, %p265
    %p267 = pneg %p266
    // Predicated region
    $region41: #{tpu_custom_call.1} parent=5 // pred_check
      _
    $region42: #{tpu_custom_call.1} parent=5 // pred_check_branch
      %269 = sbr.rel (%p266) target = $region44
    $region43: #{tpu_custom_call.1} parent=5 // pred_region
      %s270 = ssub.s32 %s21, 1
      %s271 = smul.u32 16, %s30
      %p272 = scmp.lt.s32.totalorder %s271, 15
      %s273 = scalar_select %p272, %s271, 15
      %s274 = smul.addr %s273, 8
      %s275 = scalar_lea.vmem %s1, %s274
      %p276 = pneg %p59
      %p277 = pneg %p56
      %s278 = smul.u32 16, %s30
      %p279 = scmp.lt.s32.totalorder %s278, 15
      %s280 = scalar_select %p279, %s278, 15
      %s281 = smul.addr %s280, 8
      %s282 = scalar_lea.vmem %s2, %s281
      %p283 = pneg %p85
      %p284 = pneg %p82
      %p285 = pneg %p106
      %p286 = pneg %p103
      %p287 = scmp.lt.s32.totalorder %s31, 3
      %s288 = scalar_select %p287, %s31, 3
      %s289 = smul.addr %s288, 8
      %s290 = smul.addr %s289, 4
      %s291 = scalar_lea.vmem %s4, %s290
      %p292 = pneg %p132
      %p293 = pneg %p129
      %p294 = scmp.lt.s32.totalorder %s31, 3
      %s295 = scalar_select %p294, %s31, 3
      %s296 = smul.addr %s295, 2
      %s297 = smul.addr %s296, 4
      %s298 = scalar_lea.vmem %s5, %s297
      %p299 = pneg %p158
      %p300 = pneg %p155
      %p301 = pneg %p179
      %p302 = pneg %p176
      %p303 = pneg %p205
      %p304 = pneg %p202
      %s305 = smul.u32 16, %s30
      %p306 = scmp.lt.s32.totalorder %s305, 15
      %s307 = scalar_select %p306, %s305, 15
      %s308 = smul.addr %s307, 8
      %s309 = scalar_lea.vmem %s7, %s308
      %s310 = smul.u32 16, %s30
      %p311 = scmp.lt.s32.totalorder %s310, 15
      %s312 = scalar_select %p311, %s310, 15
      %s313 = smul.addr %s312, 8
      %s314 = scalar_lea.vmem %s1, %s313
      %s315 = smul.u32 16, %s30
      %s316 = smul.u32 16, %s30
      %p317 = scmp.lt.s32.totalorder %s316, 15
      %s318 = scalar_select %p317, %s316, 15
      %s319 = smul.addr %s318, 8
      %s320 = scalar_lea.vmem %s2, %s319
      %s321 = smul.u32 16, %s30
      %p322 = scmp.lt.s32.totalorder %s31, 3
      %s323 = scalar_select %p322, %s31, 3
      %s324 = smul.addr %s323, 8
      %s325 = smul.addr %s324, 4
      %s326 = scalar_lea.vmem %s4, %s325
      %p327 = scmp.lt.s32.totalorder %s31, 3
      %s328 = scalar_select %p327, %s31, 3
      %s329 = smul.addr %s328, 2
      %s330 = smul.addr %s329, 4
      %s331 = scalar_lea.vmem %s5, %s330
      %s332 = smul.u32 16, %s30
      %p333 = scmp.lt.s32.totalorder %s332, 15
      %s334 = scalar_select %p333, %s332, 15
      %s335 = smul.addr %s334, 8
      %s336 = scalar_lea.vmem %s7, %s335
      %s337 = smul.u32 16, %s30
      %s339 = sld [smem:[#allocation5 + %s31]]
      %p340 = scmp.eq.s32.totalorder %s31, 0
      // Predicated region
      $region45: #{tpu_custom_call.1} parent=43 // pred_check
        %p341 = pneg %p340
      $region46: #{tpu_custom_call.1} parent=43 // pred_check_branch
        %343 = sbr.rel (%p341) target = $region48
      $region47: #{tpu_custom_call.1} parent=43 // pred_region
        %vm344 = vcmask 162816
        %345 = vst.msk [vmem:[#allocation2] sm:$0xff] %vm344, 0.0
        %346 = vst.msk [vmem:[#allocation2 + $0x8] sm:$0xff] %vm344, 0.0
        %347 = vst.msk [vmem:[#allocation2 + $0x10] sm:$0xff] %vm344, 0.0
        %348 = vst.msk [vmem:[#allocation2 + $0x18] sm:$0xff] %vm344, 0.0
        %349 = vst.msk [vmem:[#allocation2 + $0x20] sm:$0xff] %vm344, 0.0
        %350 = vst.msk [vmem:[#allocation2 + $0x28] sm:$0xff] %vm344, 0.0
        %351 = vst.msk [vmem:[#allocation2 + $0x30] sm:$0xff] %vm344, 0.0
        %352 = vst.msk [vmem:[#allocation2 + $0x38] sm:$0xff] %vm344, 0.0
        %353 = vst.msk [vmem:[#allocation2 + $0x40] sm:$0xff] %vm344, 0.0
        %354 = vst.msk [vmem:[#allocation2 + $0x48] sm:$0xff] %vm344, 0.0
        %355 = vst.msk [vmem:[#allocation2 + $0x50] sm:$0xff] %vm344, 0.0
        %356 = vst.msk [vmem:[#allocation2 + $0x58] sm:$0xff] %vm344, 0.0
        %357 = vst.msk [vmem:[#allocation2 + $0x60] sm:$0xff] %vm344, 0.0
        %358 = vst.msk [vmem:[#allocation2 + $0x68] sm:$0xff] %vm344, 0.0
        %359 = vst.msk [vmem:[#allocation2 + $0x70] sm:$0xff] %vm344, 0.0
        %360 = vst.msk [vmem:[#allocation2 + $0x78] sm:$0xff] %vm344, 0.0
        %361 = vst.msk [vmem:[#allocation2 + $0x80] sm:$0xff] %vm344, 0.0
        %362 = vst.msk [vmem:[#allocation2 + $0x88] sm:$0xff] %vm344, 0.0
        %363 = vst.msk [vmem:[#allocation2 + $0x90] sm:$0xff] %vm344, 0.0
        %364 = vst.msk [vmem:[#allocation2 + $0x98] sm:$0xff] %vm344, 0.0
        %vm365 = vcmask 130048
        %366 = vst.msk [vmem:[#allocation3] sm:$0xff] %vm365, 0.0
        %367 = vst.msk [vmem:[#allocation3 + $0x8] sm:$0xff] %vm365, 0.0
        %368 = vst.msk [vmem:[#allocation3 + $0x10] sm:$0xff] %vm365, 0.0
        %369 = vst.msk [vmem:[#allocation3 + $0x18] sm:$0xff] %vm365, 0.0
        %370 = vst.msk [vmem:[#allocation3 + $0x20] sm:$0xff] %vm365, 0.0
        %371 = vst.msk [vmem:[#allocation3 + $0x28] sm:$0xff] %vm365, 0.0
        %372 = vst.msk [vmem:[#allocation3 + $0x30] sm:$0xff] %vm365, 0.0
        %373 = vst.msk [vmem:[#allocation3 + $0x38] sm:$0xff] %vm365, 0.0
        %374 = vst.msk [vmem:[#allocation3 + $0x40] sm:$0xff] %vm365, 0.0
        %375 = vst.msk [vmem:[#allocation3 + $0x48] sm:$0xff] %vm365, 0.0
        %376 = vst.msk [vmem:[#allocation3 + $0x50] sm:$0xff] %vm365, 0.0
        %377 = vst.msk [vmem:[#allocation3 + $0x58] sm:$0xff] %vm365, 0.0
        %378 = vst.msk [vmem:[#allocation3 + $0x60] sm:$0xff] %vm365, 0.0
        %379 = vst.msk [vmem:[#allocation3 + $0x68] sm:$0xff] %vm365, 0.0
        %380 = vst.msk [vmem:[#allocation3 + $0x70] sm:$0xff] %vm365, 0.0
        %381 = vst.msk [vmem:[#allocation3 + $0x78] sm:$0xff] %vm365, 0.0
        %v382 = vld [vmem:[%s314] sm:$0xff]
        %v383 = vld [vmem:[%s314 + $0x8] sm:$0xff]
        %v384 = vld [vmem:[%s314 + $0x10] sm:$0xff]
        %v385 = vld [vmem:[%s314 + $0x18] sm:$0xff]
        %v386 = vld [vmem:[%s314 + $0x20] sm:$0xff]
        %v387 = vld [vmem:[%s314 + $0x28] sm:$0xff]
        %v388 = vld [vmem:[%s314 + $0x30] sm:$0xff]
        %v389 = vld [vmem:[%s314 + $0x38] sm:$0xff]
        %v390 = vld [vmem:[%s314 + $0x40] sm:$0xff]
        %v391 = vld [vmem:[%s314 + $0x48] sm:$0xff]
        %v392 = vld [vmem:[%s314 + $0x50] sm:$0xff]
        %v393 = vld [vmem:[%s314 + $0x58] sm:$0xff]
        %v394 = vld [vmem:[%s314 + $0x60] sm:$0xff]
        %v395 = vld [vmem:[%s314 + $0x68] sm:$0xff]
        %v396 = vld [vmem:[%s314 + $0x70] sm:$0xff]
        %v397 = vld [vmem:[%s314 + $0x78] sm:$0xff]
        %v398 = vpack.c.bf16 %v383, %v382
        %v399 = vpack.c.bf16 %v385, %v384
        %v400 = vpack.c.bf16 %v387, %v386
        %v401 = vpack.c.bf16 %v389, %v388
        %v402 = vpack.c.bf16 %v391, %v390
        %v403 = vpack.c.bf16 %v393, %v392
        %v404 = vpack.c.bf16 %v395, %v394
        %v405 = vpack.c.bf16 %v397, %v396
        %v406 = vld [vmem:[%s3] sm:$0x3]
        %vm407 = vcmask 31744
        %v409 = vsel %vm407, %v398, 0
        %v412 = vsel %vm407, %v399, 0
        %v415 = vsel %vm407, %v400, 0
        %v418 = vsel %vm407, %v401, 0
        %v421 = vsel %vm407, %v402, 0
        %v424 = vsel %vm407, %v403, 0
        %v427 = vsel %vm407, %v404, 0
        %v430 = vsel %vm407, %v405, 0
        %vm432 = vcmask 1041408
        %v434 = vsel %vm432, %v406, 0
        %436 = vmatpush.bf16.msra.mxu0 0
        %437 = vmatpush.bf16.msra.mxu0 0
        %438 = vmatpush.bf16.msra.mxu0 0
        %439 = vmatpush.bf16.msra.mxu0 0
        %440 = vmatpush.bf16.msra.mxu0 0
        %441 = vmatpush.bf16.msra.mxu0 0
        %442 = vmatpush.bf16.msra.mxu0 0
        %443 = vmatpush.bf16.msra.mxu0 %v434
        %444 = vmatmul.bf16.gmra.mxu0 %v409
        %v445 = vpop.f32.mrf.mxu0
        %v446 = vadd.f32 0.0, %v445
        %v447 = vpop.f32.mrf.mxu0
        %v448 = vadd.f32 0.0, %v447
        %449 = vmatmul.bf16.gmra.mxu0 %v412
        %v450 = vpop.f32.mrf.mxu0
        %v451 = vadd.f32 0.0, %v450
        %v452 = vpop.f32.mrf.mxu0
        %v453 = vadd.f32 0.0, %v452
        %454 = vmatmul.bf16.gmra.mxu0 %v415
        %v455 = vpop.f32.mrf.mxu0
        %v456 = vadd.f32 0.0, %v455
        %v457 = vpop.f32.mrf.mxu0
        %v458 = vadd.f32 0.0, %v457
        %459 = vmatmul.bf16.gmra.mxu0 %v418
        %v460 = vpop.f32.mrf.mxu0
        %v461 = vadd.f32 0.0, %v460
        %v462 = vpop.f32.mrf.mxu0
        %v463 = vadd.f32 0.0, %v462
        %464 = vmatmul.bf16.gmra.mxu0 %v421
        %v465 = vpop.f32.mrf.mxu0
        %v466 = vadd.f32 0.0, %v465
        %v467 = vpop.f32.mrf.mxu0
        %v468 = vadd.f32 0.0, %v467
        %469 = vmatmul.bf16.gmra.mxu0 %v424
        %v470 = vpop.f32.mrf.mxu0
        %v471 = vadd.f32 0.0, %v470
        %v472 = vpop.f32.mrf.mxu0
        %v473 = vadd.f32 0.0, %v472
        %474 = vmatmul.bf16.gmra.mxu0 %v427
        %v475 = vpop.f32.mrf.mxu0
        %v476 = vadd.f32 0.0, %v475
        %v477 = vpop.f32.mrf.mxu0
        %v478 = vadd.f32 0.0, %v477
        %479 = vmatmul.bf16.gmra.mxu0 %v430
        %v480 = vpop.f32.mrf.mxu0
        %v481 = vadd.f32 0.0, %v480
        %v482 = vpop.f32.mrf.mxu0
        %v483 = vadd.f32 0.0, %v482
        %484 = vdwg.mxu0
        %485 = vst.msk [vmem:[#allocation2 + $0x8] sm:$0xff] %vm365, %v446
        %486 = vst.msk [vmem:[#allocation2 + $0x10] sm:$0xff] %vm365, %v448
        %487 = vst.msk [vmem:[#allocation2 + $0x18] sm:$0xff] %vm365, %v451
        %488 = vst.msk [vmem:[#allocation2 + $0x20] sm:$0xff] %vm365, %v453
        %489 = vst.msk [vmem:[#allocation2 + $0x28] sm:$0xff] %vm365, %v456
        %490 = vst.msk [vmem:[#allocation2 + $0x30] sm:$0xff] %vm365, %v458
        %491 = vst.msk [vmem:[#allocation2 + $0x38] sm:$0xff] %vm365, %v461
        %492 = vst.msk [vmem:[#allocation2 + $0x40] sm:$0xff] %vm365, %v463
        %v493 = vld [vmem:[%s320] sm:$0xff]
        %v494 = vld [vmem:[%s320 + $0x8] sm:$0xff]
        %v495 = vld [vmem:[%s320 + $0x10] sm:$0xff]
        %v496 = vld [vmem:[%s320 + $0x18] sm:$0xff]
        %v497 = vld [vmem:[%s320 + $0x20] sm:$0xff]
        %v498 = vld [vmem:[%s320 + $0x28] sm:$0xff]
        %v499 = vld [vmem:[%s320 + $0x30] sm:$0xff]
        %v500 = vld [vmem:[%s320 + $0x38] sm:$0xff]
        %509 = vrot.lane.b32.xlu0 %v493, 16
        %v510 = vpop.permute.xlu0 %509
        %511 = vrot.lane.b32.xlu0 %v494, 16
        %v512 = vpop.permute.xlu0 %511
        %513 = vrot.lane.b32.xlu0 %v495, 16
        %v514 = vpop.permute.xlu0 %513
        %515 = vrot.lane.b32.xlu0 %v496, 16
        %v516 = vpop.permute.xlu0 %515
        %517 = vrot.lane.b32.xlu0 %v497, 16
        %v518 = vpop.permute.xlu0 %517
        %519 = vrot.lane.b32.xlu0 %v498, 16
        %v520 = vpop.permute.xlu0 %519
        %521 = vrot.lane.b32.xlu0 %v499, 16
        %v522 = vpop.permute.xlu0 %521
        %523 = vrot.lane.b32.xlu0 %v500, 16
        %v524 = vpop.permute.xlu0 %523
        %vm533 = vcmask 162944
        %534 = vst.msk [vmem:[#allocation2 + $0x8] sm:$0xff] %vm533, %v510
        %535 = vst.msk [vmem:[#allocation2 + $0x10] sm:$0xff] %vm533, %v512
        %536 = vst.msk [vmem:[#allocation2 + $0x18] sm:$0xff] %vm533, %v514
        %537 = vst.msk [vmem:[#allocation2 + $0x20] sm:$0xff] %vm533, %v516
        %538 = vst.msk [vmem:[#allocation2 + $0x28] sm:$0xff] %vm533, %v518
        %539 = vst.msk [vmem:[#allocation2 + $0x30] sm:$0xff] %vm533, %v520
        %540 = vst.msk [vmem:[#allocation2 + $0x38] sm:$0xff] %vm533, %v522
        %541 = vst.msk [vmem:[#allocation2 + $0x40] sm:$0xff] %vm533, %v524
        %s542 = scalar_lea.vmem [#allocation2], 80
        %543 = vst.msk [vmem:[%s542 + $0x8] sm:$0xff] %vm365, %v466
        %544 = vst.msk [vmem:[%s542 + $0x10] sm:$0xff] %vm365, %v468
        %545 = vst.msk [vmem:[%s542 + $0x18] sm:$0xff] %vm365, %v471
        %546 = vst.msk [vmem:[%s542 + $0x20] sm:$0xff] %vm365, %v473
        %547 = vst.msk [vmem:[%s542 + $0x28] sm:$0xff] %vm365, %v476
        %548 = vst.msk [vmem:[%s542 + $0x30] sm:$0xff] %vm365, %v478
        %549 = vst.msk [vmem:[%s542 + $0x38] sm:$0xff] %vm365, %v481
        %550 = vst.msk [vmem:[%s542 + $0x40] sm:$0xff] %vm365, %v483
        %v551 = vld [vmem:[%s320 + $0x40] sm:$0xff]
        %v552 = vld [vmem:[%s320 + $0x48] sm:$0xff]
        %v553 = vld [vmem:[%s320 + $0x50] sm:$0xff]
        %v554 = vld [vmem:[%s320 + $0x58] sm:$0xff]
        %v555 = vld [vmem:[%s320 + $0x60] sm:$0xff]
        %v556 = vld [vmem:[%s320 + $0x68] sm:$0xff]
        %v557 = vld [vmem:[%s320 + $0x70] sm:$0xff]
        %v558 = vld [vmem:[%s320 + $0x78] sm:$0xff]
        %567 = vrot.lane.b32.xlu0 %v551, 16
        %v568 = vpop.permute.xlu0 %567
        %569 = vrot.lane.b32.xlu0 %v552, 16
        %v570 = vpop.permute.xlu0 %569
        %571 = vrot.lane.b32.xlu0 %v553, 16
        %v572 = vpop.permute.xlu0 %571
        %573 = vrot.lane.b32.xlu0 %v554, 16
        %v574 = vpop.permute.xlu0 %573
        %575 = vrot.lane.b32.xlu0 %v555, 16
        %v576 = vpop.permute.xlu0 %575
        %577 = vrot.lane.b32.xlu0 %v556, 16
        %v578 = vpop.permute.xlu0 %577
        %579 = vrot.lane.b32.xlu0 %v557, 16
        %v580 = vpop.permute.xlu0 %579
        %581 = vrot.lane.b32.xlu0 %v558, 16
        %v582 = vpop.permute.xlu0 %581
        %591 = vst.msk [vmem:[%s542 + $0x8] sm:$0xff] %vm533, %v568
        %592 = vst.msk [vmem:[%s542 + $0x10] sm:$0xff] %vm533, %v570
        %593 = vst.msk [vmem:[%s542 + $0x18] sm:$0xff] %vm533, %v572
        %594 = vst.msk [vmem:[%s542 + $0x20] sm:$0xff] %vm533, %v574
        %595 = vst.msk [vmem:[%s542 + $0x28] sm:$0xff] %vm533, %v576
        %596 = vst.msk [vmem:[%s542 + $0x30] sm:$0xff] %vm533, %v578
        %597 = vst.msk [vmem:[%s542 + $0x38] sm:$0xff] %vm533, %v580
        %598 = vst.msk [vmem:[%s542 + $0x40] sm:$0xff] %vm533, %v582
      $region48: #{tpu_custom_call.1} parent=43 // pred_fallthru
        _
      %s599 = ssub.s32 8, %s339
      %s600 = scalar_lea.vmem [#allocation2], %s599
      %v601 = vld [vmem:[%s600] sm:$0xff]
      %v602 = vld [vmem:[%s600 + $0x8] sm:$0xff]
      %v603 = vld [vmem:[%s600 + $0x10] sm:$0xff]
      %v604 = vld [vmem:[%s600 + $0x18] sm:$0xff]
      %v605 = vld [vmem:[%s600 + $0x20] sm:$0xff]
      %v606 = vld [vmem:[%s600 + $0x28] sm:$0xff]
      %v607 = vld [vmem:[%s600 + $0x30] sm:$0xff]
      %v608 = vld [vmem:[%s600 + $0x38] sm:$0xff]
      %v609 = vpack.c.bf16 %v601, %v601
      %v610 = vpack.c.bf16 %v602, %v602
      %v611 = vpack.c.bf16 %v603, %v603
      %v612 = vpack.c.bf16 %v604, %v604
      %v613 = vpack.c.bf16 %v605, %v605
      %v614 = vpack.c.bf16 %v606, %v606
      %v615 = vpack.c.bf16 %v607, %v607
      %v616 = vpack.c.bf16 %v608, %v608
      %v617 = vld [vmem:[#allocation2 + $0x8] sm:$0xff]
      %v618 = vld [vmem:[#allocation2 + $0x10] sm:$0xff]
      %v619 = vld [vmem:[#allocation2 + $0x18] sm:$0xff]
      %v620 = vld [vmem:[#allocation2 + $0x20] sm:$0xff]
      %v621 = vld [vmem:[#allocation2 + $0x28] sm:$0xff]
      %v622 = vld [vmem:[#allocation2 + $0x30] sm:$0xff]
      %v623 = vld [vmem:[#allocation2 + $0x38] sm:$0xff]
      %v624 = vld [vmem:[#allocation2 + $0x40] sm:$0xff]
      %v625 = vpack.c.bf16 %v617, %v617
      %v626 = vpack.c.bf16 %v618, %v618
      %v627 = vpack.c.bf16 %v619, %v619
      %v628 = vpack.c.bf16 %v620, %v620
      %v629 = vpack.c.bf16 %v621, %v621
      %v630 = vpack.c.bf16 %v622, %v622
      %v631 = vpack.c.bf16 %v623, %v623
      %v632 = vpack.c.bf16 %v624, %v624
      %s633 = sadd.s32 %s339, 8
      %s634 = scalar_lea.vmem [#allocation2], %s633
      %v635 = vld [vmem:[%s634] sm:$0xff]
      %v636 = vld [vmem:[%s634 + $0x8] sm:$0xff]
      %v637 = vld [vmem:[%s634 + $0x10] sm:$0xff]
      %v638 = vld [vmem:[%s634 + $0x18] sm:$0xff]
      %v639 = vld [vmem:[%s634 + $0x20] sm:$0xff]
      %v640 = vld [vmem:[%s634 + $0x28] sm:$0xff]
      %v641 = vld [vmem:[%s634 + $0x30] sm:$0xff]
      %v642 = vld [vmem:[%s634 + $0x38] sm:$0xff]
      %v643 = vpack.c.bf16 %v635, %v635
      %v644 = vpack.c.bf16 %v636, %v636
      %v645 = vpack.c.bf16 %v637, %v637
      %v646 = vpack.c.bf16 %v638, %v638
      %v647 = vpack.c.bf16 %v639, %v639
      %v648 = vpack.c.bf16 %v640, %v640
      %v649 = vpack.c.bf16 %v641, %v641
      %v650 = vpack.c.bf16 %v642, %v642
      %v659 = vunpack.c.l.b16 %v609
      %v660 = vunpack.c.l.b16 %v610
      %v661 = vunpack.c.l.b16 %v611
      %v662 = vunpack.c.l.b16 %v612
      %v663 = vunpack.c.l.b16 %v613
      %v664 = vunpack.c.l.b16 %v614
      %v665 = vunpack.c.l.b16 %v615
      %v666 = vunpack.c.l.b16 %v616
      %v667 = vpack.c.b16 %v660, %v659
      %v668 = vpack.c.b16 %v662, %v661
      %v669 = vpack.c.b16 %v664, %v663
      %v670 = vpack.c.b16 %v666, %v665
      %v679 = vunpack.c.l.b16 %v625
      %v680 = vunpack.c.l.b16 %v626
      %v681 = vunpack.c.l.b16 %v627
      %v682 = vunpack.c.l.b16 %v628
      %v683 = vunpack.c.l.b16 %v629
      %v684 = vunpack.c.l.b16 %v630
      %v685 = vunpack.c.l.b16 %v631
      %v686 = vunpack.c.l.b16 %v632
      %v687 = vpack.c.b16 %v680, %v679
      %v688 = vpack.c.b16 %v682, %v681
      %v689 = vpack.c.b16 %v684, %v683
      %v690 = vpack.c.b16 %v686, %v685
      %691 = vrot.lane.b32.xlu0 %v687, 20
      %v692 = vpop.permute.xlu0 %691
      %693 = vrot.lane.b32.xlu0 %v688, 20
      %v694 = vpop.permute.xlu0 %693
      %695 = vrot.lane.b32.xlu0 %v689, 20
      %v696 = vpop.permute.xlu0 %695
      %697 = vrot.lane.b32.xlu0 %v690, 20
      %v698 = vpop.permute.xlu0 %697
      %v707 = vunpack.c.l.b16 %v643
      %v708 = vunpack.c.l.b16 %v644
      %v709 = vunpack.c.l.b16 %v645
      %v710 = vunpack.c.l.b16 %v646
      %v711 = vunpack.c.l.b16 %v647
      %v712 = vunpack.c.l.b16 %v648
      %v713 = vunpack.c.l.b16 %v649
      %v714 = vunpack.c.l.b16 %v650
      %v715 = vpack.c.b16 %v708, %v707
      %v716 = vpack.c.b16 %v710, %v709
      %v717 = vpack.c.b16 %v712, %v711
      %v718 = vpack.c.b16 %v714, %v713
      %719 = vrot.lane.b32.xlu0 %v715, 40
      %v720 = vpop.permute.xlu0 %719
      %721 = vrot.lane.b32.xlu0 %v716, 40
      %v722 = vpop.permute.xlu0 %721
      %723 = vrot.lane.b32.xlu0 %v717, 40
      %v724 = vpop.permute.xlu0 %723
      %725 = vrot.lane.b32.xlu0 %v718, 40
      %v726 = vpop.permute.xlu0 %725
      %vm727 = vcmask 162816
      %v730 = vsel %vm727, %v667, %v692
      %v733 = vsel %vm727, %v668, %v694
      %v736 = vsel %vm727, %v669, %v696
      %v739 = vsel %vm727, %v670, %v698
      %vm740 = vcmask 326656
      %v742 = vsel %vm740, %v730, %v720
      %v744 = vsel %vm740, %v733, %v722
      %v746 = vsel %vm740, %v736, %v724
      %v748 = vsel %vm740, %v739, %v726
      %s749 = sadd.s32 %s599, 80
      %s750 = scalar_lea.vmem [#allocation2], %s749
      %v751 = vld [vmem:[%s750] sm:$0xff]
      %v752 = vld [vmem:[%s750 + $0x8] sm:$0xff]
      %v753 = vld [vmem:[%s750 + $0x10] sm:$0xff]
      %v754 = vld [vmem:[%s750 + $0x18] sm:$0xff]
      %v755 = vld [vmem:[%s750 + $0x20] sm:$0xff]
      %v756 = vld [vmem:[%s750 + $0x28] sm:$0xff]
      %v757 = vld [vmem:[%s750 + $0x30] sm:$0xff]
      %v758 = vld [vmem:[%s750 + $0x38] sm:$0xff]
      %v759 = vpack.c.bf16 %v751, %v751
      %v760 = vpack.c.bf16 %v752, %v752
      %v761 = vpack.c.bf16 %v753, %v753
      %v762 = vpack.c.bf16 %v754, %v754
      %v763 = vpack.c.bf16 %v755, %v755
      %v764 = vpack.c.bf16 %v756, %v756
      %v765 = vpack.c.bf16 %v757, %v757
      %v766 = vpack.c.bf16 %v758, %v758
      %s767 = scalar_lea.vmem [#allocation2], 80
      %v768 = vld [vmem:[%s767 + $0x8] sm:$0xff]
      %v769 = vld [vmem:[%s767 + $0x10] sm:$0xff]
      %v770 = vld [vmem:[%s767 + $0x18] sm:$0xff]
      %v771 = vld [vmem:[%s767 + $0x20] sm:$0xff]
      %v772 = vld [vmem:[%s767 + $0x28] sm:$0xff]
      %v773 = vld [vmem:[%s767 + $0x30] sm:$0xff]
      %v774 = vld [vmem:[%s767 + $0x38] sm:$0xff]
      %v775 = vld [vmem:[%s767 + $0x40] sm:$0xff]
      %v776 = vpack.c.bf16 %v768, %v768
      %v777 = vpack.c.bf16 %v769, %v769
      %v778 = vpack.c.bf16 %v770, %v770
      %v779 = vpack.c.bf16 %v771, %v771
      %v780 = vpack.c.bf16 %v772, %v772
      %v781 = vpack.c.bf16 %v773, %v773
      %v782 = vpack.c.bf16 %v774, %v774
      %v783 = vpack.c.bf16 %v775, %v775
      %s784 = sadd.s32 %s633, 80
      %s785 = scalar_lea.vmem [#allocation2], %s784
      %v786 = vld [vmem:[%s785] sm:$0xff]
      %v787 = vld [vmem:[%s785 + $0x8] sm:$0xff]
      %v788 = vld [vmem:[%s785 + $0x10] sm:$0xff]
      %v789 = vld [vmem:[%s785 + $0x18] sm:$0xff]
      %v790 = vld [vmem:[%s785 + $0x20] sm:$0xff]
      %v791 = vld [vmem:[%s785 + $0x28] sm:$0xff]
      %v792 = vld [vmem:[%s785 + $0x30] sm:$0xff]
      %v793 = vld [vmem:[%s785 + $0x38] sm:$0xff]
      %v794 = vpack.c.bf16 %v786, %v786
      %v795 = vpack.c.bf16 %v787, %v787
      %v796 = vpack.c.bf16 %v788, %v788
      %v797 = vpack.c.bf16 %v789, %v789
      %v798 = vpack.c.bf16 %v790, %v790
      %v799 = vpack.c.bf16 %v791, %v791
      %v800 = vpack.c.bf16 %v792, %v792
      %v801 = vpack.c.bf16 %v793, %v793
      %v810 = vunpack.c.l.b16 %v759
      %v811 = vunpack.c.l.b16 %v760
      %v812 = vunpack.c.l.b16 %v761
      %v813 = vunpack.c.l.b16 %v762
      %v814 = vunpack.c.l.b16 %v763
      %v815 = vunpack.c.l.b16 %v764
      %v816 = vunpack.c.l.b16 %v765
      %v817 = vunpack.c.l.b16 %v766
      %v818 = vpack.c.b16 %v811, %v810
      %v819 = vpack.c.b16 %v813, %v812
      %v820 = vpack.c.b16 %v815, %v814
      %v821 = vpack.c.b16 %v817, %v816
      %v830 = vunpack.c.l.b16 %v776
      %v831 = vunpack.c.l.b16 %v777
      %v832 = vunpack.c.l.b16 %v778
      %v833 = vunpack.c.l.b16 %v779
      %v834 = vunpack.c.l.b16 %v780
      %v835 = vunpack.c.l.b16 %v781
      %v836 = vunpack.c.l.b16 %v782
      %v837 = vunpack.c.l.b16 %v783
      %v838 = vpack.c.b16 %v831, %v830
      %v839 = vpack.c.b16 %v833, %v832
      %v840 = vpack.c.b16 %v835, %v834
      %v841 = vpack.c.b16 %v837, %v836
      %842 = vrot.lane.b32.xlu0 %v838, 20
      %v843 = vpop.permute.xlu0 %842
      %844 = vrot.lane.b32.xlu0 %v839, 20
      %v845 = vpop.permute.xlu0 %844
      %846 = vrot.lane.b32.xlu0 %v840, 20
      %v847 = vpop.permute.xlu0 %846
      %848 = vrot.lane.b32.xlu0 %v841, 20
      %v849 = vpop.permute.xlu0 %848
      %v858 = vunpack.c.l.b16 %v794
      %v859 = vunpack.c.l.b16 %v795
      %v860 = vunpack.c.l.b16 %v796
      %v861 = vunpack.c.l.b16 %v797
      %v862 = vunpack.c.l.b16 %v798
      %v863 = vunpack.c.l.b16 %v799
      %v864 = vunpack.c.l.b16 %v800
      %v865 = vunpack.c.l.b16 %v801
      %v866 = vpack.c.b16 %v859, %v858
      %v867 = vpack.c.b16 %v861, %v860
      %v868 = vpack.c.b16 %v863, %v862
      %v869 = vpack.c.b16 %v865, %v864
      %870 = vrot.lane.b32.xlu0 %v866, 40
      %v871 = vpop.permute.xlu0 %870
      %872 = vrot.lane.b32.xlu0 %v867, 40
      %v873 = vpop.permute.xlu0 %872
      %874 = vrot.lane.b32.xlu0 %v868, 40
      %v875 = vpop.permute.xlu0 %874
      %876 = vrot.lane.b32.xlu0 %v869, 40
      %v877 = vpop.permute.xlu0 %876
      %v880 = vsel %vm727, %v818, %v843
      %v883 = vsel %vm727, %v819, %v845
      %v886 = vsel %vm727, %v820, %v847
      %v889 = vsel %vm727, %v821, %v849
      %v891 = vsel %vm740, %v880, %v871
      %v893 = vsel %vm740, %v883, %v873
      %v895 = vsel %vm740, %v886, %v875
      %v897 = vsel %vm740, %v889, %v877
      %v898 = vld [vmem:[%s326] sm:$0xf]
      %v899 = vld [vmem:[%s326 + $0x4] sm:$0xf]
      %v900 = vld [vmem:[%s326 + $0x8] sm:$0xf]
      %v901 = vld [vmem:[%s326 + $0xc] sm:$0xf]
      %v902 = vld [vmem:[%s326 + $0x10] sm:$0xf]
      %v903 = vld [vmem:[%s326 + $0x14] sm:$0xf]
      %v904 = vld [vmem:[%s326 + $0x18] sm:$0xf]
      %v905 = vld [vmem:[%s326 + $0x1c] sm:$0x3]
      %v914 = vunpack.c.l.b16 %v898
      %v915 = vunpack.c.l.b16 %v899
      %v916 = vunpack.c.l.b16 %v900
      %v917 = vunpack.c.l.b16 %v901
      %v918 = vunpack.c.l.b16 %v902
      %v919 = vunpack.c.l.b16 %v903
      %v920 = vunpack.c.l.b16 %v904
      %v921 = vunpack.c.l.b16 %v905
      %v922 = vpack.c.b16 %v915, %v914
      %v923 = vpack.c.b16 %v917, %v916
      %v924 = vpack.c.b16 %v919, %v918
      %v925 = vpack.c.b16 %v921, %v920
      %vm929 = vcmask 490496
      %v930 = vsel %vm929, %v742, 0
      %v932 = vsel %vm929, %v744, 0
      %v934 = vsel %vm929, %v746, 0
      %v936 = vsel %vm929, %v748, 0
      %v938 = vsel %vm929, %v891, 0
      %v940 = vsel %vm929, %v893, 0
      %v942 = vsel %vm929, %v895, 0
      %v944 = vsel %vm929, %v897, 0
      %vm946 = vcmask 1045504
      %v948 = vsel %vm946, %v925, 0
      %950 = vmatpush.bf16.msra.mxu0 0
      %951 = vmatpush.bf16.msra.mxu0 0
      %952 = vmatpush.bf16.msra.mxu0 0
      %953 = vmatpush.bf16.msra.mxu0 0
      %954 = vmatpush.bf16.msra.mxu0 %v948
      %955 = vmatpush.bf16.msra.mxu0 %v924
      %956 = vmatpush.bf16.msra.mxu0 %v923
      %957 = vmatpush.bf16.msra.mxu0 %v922
      %958 = vmatmul.bf16.gmra.mxu0 %v930
      %v959 = vpop.f32.mrf.mxu0
      %v960 = vadd.f32 0.0, %v959
      %v961 = vpop.f32.mrf.mxu0
      %v962 = vadd.f32 0.0, %v961
      %963 = vmatmul.bf16.gmra.mxu0 %v932
      %v964 = vpop.f32.mrf.mxu0
      %v965 = vadd.f32 0.0, %v964
      %v966 = vpop.f32.mrf.mxu0
      %v967 = vadd.f32 0.0, %v966
      %968 = vmatmul.bf16.gmra.mxu0 %v934
      %v969 = vpop.f32.mrf.mxu0
      %v970 = vadd.f32 0.0, %v969
      %v971 = vpop.f32.mrf.mxu0
      %v972 = vadd.f32 0.0, %v971
      %973 = vmatmul.bf16.gmra.mxu0 %v936
      %v974 = vpop.f32.mrf.mxu0
      %v975 = vadd.f32 0.0, %v974
      %v976 = vpop.f32.mrf.mxu0
      %v977 = vadd.f32 0.0, %v976
      %978 = vmatmul.bf16.gmra.mxu0 %v938
      %v979 = vpop.f32.mrf.mxu0
      %v980 = vadd.f32 0.0, %v979
      %v981 = vpop.f32.mrf.mxu0
      %v982 = vadd.f32 0.0, %v981
      %983 = vmatmul.bf16.gmra.mxu0 %v940
      %v984 = vpop.f32.mrf.mxu0
      %v985 = vadd.f32 0.0, %v984
      %v986 = vpop.f32.mrf.mxu0
      %v987 = vadd.f32 0.0, %v986
      %988 = vmatmul.bf16.gmra.mxu0 %v942
      %v989 = vpop.f32.mrf.mxu0
      %v990 = vadd.f32 0.0, %v989
      %v991 = vpop.f32.mrf.mxu0
      %v992 = vadd.f32 0.0, %v991
      %993 = vmatmul.bf16.gmra.mxu0 %v944
      %v994 = vpop.f32.mrf.mxu0
      %v995 = vadd.f32 0.0, %v994
      %v996 = vpop.f32.mrf.mxu0
      %v997 = vadd.f32 0.0, %v996
      %998 = vdwg.mxu0
      %v999 = vtanh.pop %v960
      %v1000 = vtanh.pop %v962
      %v1001 = vtanh.pop %v965
      %v1002 = vtanh.pop %v967
      %v1003 = vtanh.pop %v970
      %v1004 = vtanh.pop %v972
      %v1005 = vtanh.pop %v975
      %v1006 = vtanh.pop %v977
      %v1007 = vtanh.pop %v980
      %v1008 = vtanh.pop %v982
      %v1009 = vtanh.pop %v985
      %v1010 = vtanh.pop %v987
      %v1011 = vtanh.pop %v990
      %v1012 = vtanh.pop %v992
      %v1013 = vtanh.pop %v995
      %v1014 = vtanh.pop %v997
      %v1015 = vxor.u32 %v960, 2147483648
      %v1016 = vxor.u32 %v962, 2147483648
      %v1017 = vxor.u32 %v965, 2147483648
      %v1018 = vxor.u32 %v967, 2147483648
      %v1019 = vxor.u32 %v970, 2147483648
      %v1020 = vxor.u32 %v972, 2147483648
      %v1021 = vxor.u32 %v975, 2147483648
      %v1022 = vxor.u32 %v977, 2147483648
      %v1023 = vxor.u32 %v980, 2147483648
      %v1024 = vxor.u32 %v982, 2147483648
      %v1025 = vxor.u32 %v985, 2147483648
      %v1026 = vxor.u32 %v987, 2147483648
      %v1027 = vxor.u32 %v990, 2147483648
      %v1028 = vxor.u32 %v992, 2147483648
      %v1029 = vxor.u32 %v995, 2147483648
      %v1030 = vxor.u32 %v997, 2147483648
      %v1031 = vmul.f32 %v1015, 1.442695
      %v1032 = vpow.pop %v1031
      %v1033 = vmul.f32 %v1016, 1.442695
      %v1034 = vpow.pop %v1033
      %v1035 = vmul.f32 %v1017, 1.442695
      %v1036 = vpow.pop %v1035
      %v1037 = vmul.f32 %v1018, 1.442695
      %v1038 = vpow.pop %v1037
      %v1039 = vmul.f32 %v1019, 1.442695
      %v1040 = vpow.pop %v1039
      %v1041 = vmul.f32 %v1020, 1.442695
      %v1042 = vpow.pop %v1041
      %v1043 = vmul.f32 %v1021, 1.442695
      %v1044 = vpow.pop %v1043
      %v1045 = vmul.f32 %v1022, 1.442695
      %v1046 = vpow.pop %v1045
      %v1047 = vmul.f32 %v1023, 1.442695
      %v1048 = vpow.pop %v1047
      %v1049 = vmul.f32 %v1024, 1.442695
      %v1050 = vpow.pop %v1049
      %v1051 = vmul.f32 %v1025, 1.442695
      %v1052 = vpow.pop %v1051
      %v1053 = vmul.f32 %v1026, 1.442695
      %v1054 = vpow.pop %v1053
      %v1055 = vmul.f32 %v1027, 1.442695
      %v1056 = vpow.pop %v1055
      %v1057 = vmul.f32 %v1028, 1.442695
      %v1058 = vpow.pop %v1057
      %v1059 = vmul.f32 %v1029, 1.442695
      %v1060 = vpow.pop %v1059
      %v1061 = vmul.f32 %v1030, 1.442695
      %v1062 = vpow.pop %v1061
      %v1063 = vadd.f32 %v1032, 1.0
      %v1064 = vadd.f32 %v1034, 1.0
      %v1065 = vadd.f32 %v1036, 1.0
      %v1066 = vadd.f32 %v1038, 1.0
      %v1067 = vadd.f32 %v1040, 1.0
      %v1068 = vadd.f32 %v1042, 1.0
      %v1069 = vadd.f32 %v1044, 1.0
      %v1070 = vadd.f32 %v1046, 1.0
      %v1071 = vadd.f32 %v1048, 1.0
      %v1072 = vadd.f32 %v1050, 1.0
      %v1073 = vadd.f32 %v1052, 1.0
      %v1074 = vadd.f32 %v1054, 1.0
      %v1075 = vadd.f32 %v1056, 1.0
      %v1076 = vadd.f32 %v1058, 1.0
      %v1077 = vadd.f32 %v1060, 1.0
      %v1078 = vadd.f32 %v1062, 1.0
      %v1079 = vrcp.pop %v1063
      %v1080 = vmul.f32 %v1063, %v1079
      %v1081 = vsub.f32 1.0, %v1080
      %v1082 = vmul.f32 %v1079, %v1081
      %v1083 = vadd.f32 %v1079, %v1082
      %vm1084 = vweird.f32 %v1063
      %vm1085 = vweird.f32 %v1079
      %vm1086 = vmor %vm1084, %vm1085
      %v1087 = vsel %vm1086, %v1079, %v1083
      %v1088 = vand.u32 2147483647, %v1063
      %vm1089 = vcmp.eq.f32.partialorder %v1088, 8.507059e+37
      %v1090 = vand.u32 %v1063, 2147483648
      %v1091 = vor.u32 1.1754944e-38, %v1090
      %v1092 = vsel %vm1089, %v1091, %v1087
      %v1093 = vmul.f32 1.0, %v1092
      %v1094 = vrcp.pop %v1064
      %v1095 = vmul.f32 %v1064, %v1094
      %v1096 = vsub.f32 1.0, %v1095
      %v1097 = vmul.f32 %v1094, %v1096
      %v1098 = vadd.f32 %v1094, %v1097
      %vm1099 = vweird.f32 %v1064
      %vm1100 = vweird.f32 %v1094
      %vm1101 = vmor %vm1099, %vm1100
      %v1102 = vsel %vm1101, %v1094, %v1098
      %v1103 = vand.u32 2147483647, %v1064
      %vm1104 = vcmp.eq.f32.partialorder %v1103, 8.507059e+37
      %v1105 = vand.u32 %v1064, 2147483648
      %v1106 = vor.u32 1.1754944e-38, %v1105
      %v1107 = vsel %vm1104, %v1106, %v1102
      %v1108 = vmul.f32 1.0, %v1107
      %v1109 = vrcp.pop %v1065
      %v1110 = vmul.f32 %v1065, %v1109
      %v1111 = vsub.f32 1.0, %v1110
      %v1112 = vmul.f32 %v1109, %v1111
      %v1113 = vadd.f32 %v1109, %v1112
      %vm1114 = vweird.f32 %v1065
      %vm1115 = vweird.f32 %v1109
      %vm1116 = vmor %vm1114, %vm1115
      %v1117 = vsel %vm1116, %v1109, %v1113
      %v1118 = vand.u32 2147483647, %v1065
      %vm1119 = vcmp.eq.f32.partialorder %v1118, 8.507059e+37
      %v1120 = vand.u32 %v1065, 2147483648
      %v1121 = vor.u32 1.1754944e-38, %v1120
      %v1122 = vsel %vm1119, %v1121, %v1117
      %v1123 = vmul.f32 1.0, %v1122
      %v1124 = vrcp.pop %v1066
      %v1125 = vmul.f32 %v1066, %v1124
      %v1126 = vsub.f32 1.0, %v1125
      %v1127 = vmul.f32 %v1124, %v1126
      %v1128 = vadd.f32 %v1124, %v1127
      %vm1129 = vweird.f32 %v1066
      %vm1130 = vweird.f32 %v1124
      %vm1131 = vmor %vm1129, %vm1130
      %v1132 = vsel %vm1131, %v1124, %v1128
      %v1133 = vand.u32 2147483647, %v1066
      %vm1134 = vcmp.eq.f32.partialorder %v1133, 8.507059e+37
      %v1135 = vand.u32 %v1066, 2147483648
      %v1136 = vor.u32 1.1754944e-38, %v1135
      %v1137 = vsel %vm1134, %v1136, %v1132
      %v1138 = vmul.f32 1.0, %v1137
      %v1139 = vrcp.pop %v1067
      %v1140 = vmul.f32 %v1067, %v1139
      %v1141 = vsub.f32 1.0, %v1140
      %v1142 = vmul.f32 %v1139, %v1141
      %v1143 = vadd.f32 %v1139, %v1142
      %vm1144 = vweird.f32 %v1067
      %vm1145 = vweird.f32 %v1139
      %vm1146 = vmor %vm1144, %vm1145
      %v1147 = vsel %vm1146, %v1139, %v1143
      %v1148 = vand.u32 2147483647, %v1067
      %vm1149 = vcmp.eq.f32.partialorder %v1148, 8.507059e+37
      %v1150 = vand.u32 %v1067, 2147483648
      %v1151 = vor.u32 1.1754944e-38, %v1150
      %v1152 = vsel %vm1149, %v1151, %v1147
      %v1153 = vmul.f32 1.0, %v1152
      %v1154 = vrcp.pop %v1068
      %v1155 = vmul.f32 %v1068, %v1154
      %v1156 = vsub.f32 1.0, %v1155
      %v1157 = vmul.f32 %v1154, %v1156
      %v1158 = vadd.f32 %v1154, %v1157
      %vm1159 = vweird.f32 %v1068
      %vm1160 = vweird.f32 %v1154
      %vm1161 = vmor %vm1159, %vm1160
      %v1162 = vsel %vm1161, %v1154, %v1158
      %v1163 = vand.u32 2147483647, %v1068
      %vm1164 = vcmp.eq.f32.partialorder %v1163, 8.507059e+37
      %v1165 = vand.u32 %v1068, 2147483648
      %v1166 = vor.u32 1.1754944e-38, %v1165
      %v1167 = vsel %vm1164, %v1166, %v1162
      %v1168 = vmul.f32 1.0, %v1167
      %v1169 = vrcp.pop %v1069
      %v1170 = vmul.f32 %v1069, %v1169
      %v1171 = vsub.f32 1.0, %v1170
      %v1172 = vmul.f32 %v1169, %v1171
      %v1173 = vadd.f32 %v1169, %v1172
      %vm1174 = vweird.f32 %v1069
      %vm1175 = vweird.f32 %v1169
      %vm1176 = vmor %vm1174, %vm1175
      %v1177 = vsel %vm1176, %v1169, %v1173
      %v1178 = vand.u32 2147483647, %v1069
      %vm1179 = vcmp.eq.f32.partialorder %v1178, 8.507059e+37
      %v1180 = vand.u32 %v1069, 2147483648
      %v1181 = vor.u32 1.1754944e-38, %v1180
      %v1182 = vsel %vm1179, %v1181, %v1177
      %v1183 = vmul.f32 1.0, %v1182
      %v1184 = vrcp.pop %v1070
      %v1185 = vmul.f32 %v1070, %v1184
      %v1186 = vsub.f32 1.0, %v1185
      %v1187 = vmul.f32 %v1184, %v1186
      %v1188 = vadd.f32 %v1184, %v1187
      %vm1189 = vweird.f32 %v1070
      %vm1190 = vweird.f32 %v1184
      %vm1191 = vmor %vm1189, %vm1190
      %v1192 = vsel %vm1191, %v1184, %v1188
      %v1193 = vand.u32 2147483647, %v1070
      %vm1194 = vcmp.eq.f32.partialorder %v1193, 8.507059e+37
      %v1195 = vand.u32 %v1070, 2147483648
      %v1196 = vor.u32 1.1754944e-38, %v1195
      %v1197 = vsel %vm1194, %v1196, %v1192
      %v1198 = vmul.f32 1.0, %v1197
      %v1199 = vrcp.pop %v1071
      %v1200 = vmul.f32 %v1071, %v1199
      %v1201 = vsub.f32 1.0, %v1200
      %v1202 = vmul.f32 %v1199, %v1201
      %v1203 = vadd.f32 %v1199, %v1202
      %vm1204 = vweird.f32 %v1071
      %vm1205 = vweird.f32 %v1199
      %vm1206 = vmor %vm1204, %vm1205
      %v1207 = vsel %vm1206, %v1199, %v1203
      %v1208 = vand.u32 2147483647, %v1071
      %vm1209 = vcmp.eq.f32.partialorder %v1208, 8.507059e+37
      %v1210 = vand.u32 %v1071, 2147483648
      %v1211 = vor.u32 1.1754944e-38, %v1210
      %v1212 = vsel %vm1209, %v1211, %v1207
      %v1213 = vmul.f32 1.0, %v1212
      %v1214 = vrcp.pop %v1072
      %v1215 = vmul.f32 %v1072, %v1214
      %v1216 = vsub.f32 1.0, %v1215
      %v1217 = vmul.f32 %v1214, %v1216
      %v1218 = vadd.f32 %v1214, %v1217
      %vm1219 = vweird.f32 %v1072
      %vm1220 = vweird.f32 %v1214
      %vm1221 = vmor %vm1219, %vm1220
      %v1222 = vsel %vm1221, %v1214, %v1218
      %v1223 = vand.u32 2147483647, %v1072
      %vm1224 = vcmp.eq.f32.partialorder %v1223, 8.507059e+37
      %v1225 = vand.u32 %v1072, 2147483648
      %v1226 = vor.u32 1.1754944e-38, %v1225
      %v1227 = vsel %vm1224, %v1226, %v1222
      %v1228 = vmul.f32 1.0, %v1227
      %v1229 = vrcp.pop %v1073
      %v1230 = vmul.f32 %v1073, %v1229
      %v1231 = vsub.f32 1.0, %v1230
      %v1232 = vmul.f32 %v1229, %v1231
      %v1233 = vadd.f32 %v1229, %v1232
      %vm1234 = vweird.f32 %v1073
      %vm1235 = vweird.f32 %v1229
      %vm1236 = vmor %vm1234, %vm1235
      %v1237 = vsel %vm1236, %v1229, %v1233
      %v1238 = vand.u32 2147483647, %v1073
      %vm1239 = vcmp.eq.f32.partialorder %v1238, 8.507059e+37
      %v1240 = vand.u32 %v1073, 2147483648
      %v1241 = vor.u32 1.1754944e-38, %v1240
      %v1242 = vsel %vm1239, %v1241, %v1237
      %v1243 = vmul.f32 1.0, %v1242
      %v1244 = vrcp.pop %v1074
      %v1245 = vmul.f32 %v1074, %v1244
      %v1246 = vsub.f32 1.0, %v1245
      %v1247 = vmul.f32 %v1244, %v1246
      %v1248 = vadd.f32 %v1244, %v1247
      %vm1249 = vweird.f32 %v1074
      %vm1250 = vweird.f32 %v1244
      %vm1251 = vmor %vm1249, %vm1250
      %v1252 = vsel %vm1251, %v1244, %v1248
      %v1253 = vand.u32 2147483647, %v1074
      %vm1254 = vcmp.eq.f32.partialorder %v1253, 8.507059e+37
      %v1255 = vand.u32 %v1074, 2147483648
      %v1256 = vor.u32 1.1754944e-38, %v1255
      %v1257 = vsel %vm1254, %v1256, %v1252
      %v1258 = vmul.f32 1.0, %v1257
      %v1259 = vrcp.pop %v1075
      %v1260 = vmul.f32 %v1075, %v1259
      %v1261 = vsub.f32 1.0, %v1260
      %v1262 = vmul.f32 %v1259, %v1261
      %v1263 = vadd.f32 %v1259, %v1262
      %vm1264 = vweird.f32 %v1075
      %vm1265 = vweird.f32 %v1259
      %vm1266 = vmor %vm1264, %vm1265
      %v1267 = vsel %vm1266, %v1259, %v1263
      %v1268 = vand.u32 2147483647, %v1075
      %vm1269 = vcmp.eq.f32.partialorder %v1268, 8.507059e+37
      %v1270 = vand.u32 %v1075, 2147483648
      %v1271 = vor.u32 1.1754944e-38, %v1270
      %v1272 = vsel %vm1269, %v1271, %v1267
      %v1273 = vmul.f32 1.0, %v1272
      %v1274 = vrcp.pop %v1076
      %v1275 = vmul.f32 %v1076, %v1274
      %v1276 = vsub.f32 1.0, %v1275
      %v1277 = vmul.f32 %v1274, %v1276
      %v1278 = vadd.f32 %v1274, %v1277
      %vm1279 = vweird.f32 %v1076
      %vm1280 = vweird.f32 %v1274
      %vm1281 = vmor %vm1279, %vm1280
      %v1282 = vsel %vm1281, %v1274, %v1278
      %v1283 = vand.u32 2147483647, %v1076
      %vm1284 = vcmp.eq.f32.partialorder %v1283, 8.507059e+37
      %v1285 = vand.u32 %v1076, 2147483648
      %v1286 = vor.u32 1.1754944e-38, %v1285
      %v1287 = vsel %vm1284, %v1286, %v1282
      %v1288 = vmul.f32 1.0, %v1287
      %v1289 = vrcp.pop %v1077
      %v1290 = vmul.f32 %v1077, %v1289
      %v1291 = vsub.f32 1.0, %v1290
      %v1292 = vmul.f32 %v1289, %v1291
      %v1293 = vadd.f32 %v1289, %v1292
      %vm1294 = vweird.f32 %v1077
      %vm1295 = vweird.f32 %v1289
      %vm1296 = vmor %vm1294, %vm1295
      %v1297 = vsel %vm1296, %v1289, %v1293
      %v1298 = vand.u32 2147483647, %v1077
      %vm1299 = vcmp.eq.f32.partialorder %v1298, 8.507059e+37
      %v1300 = vand.u32 %v1077, 2147483648
      %v1301 = vor.u32 1.1754944e-38, %v1300
      %v1302 = vsel %vm1299, %v1301, %v1297
      %v1303 = vmul.f32 1.0, %v1302
      %v1304 = vrcp.pop %v1078
      %v1305 = vmul.f32 %v1078, %v1304
      %v1306 = vsub.f32 1.0, %v1305
      %v1307 = vmul.f32 %v1304, %v1306
      %v1308 = vadd.f32 %v1304, %v1307
      %vm1309 = vweird.f32 %v1078
      %vm1310 = vweird.f32 %v1304
      %vm1311 = vmor %vm1309, %vm1310
      %v1312 = vsel %vm1311, %v1304, %v1308
      %v1313 = vand.u32 2147483647, %v1078
      %vm1314 = vcmp.eq.f32.partialorder %v1313, 8.507059e+37
      %v1315 = vand.u32 %v1078, 2147483648
      %v1316 = vor.u32 1.1754944e-38, %v1315
      %v1317 = vsel %vm1314, %v1316, %v1312
      %v1318 = vmul.f32 1.0, %v1317
      %1335 = vrot.lane.b32.xlu0 %v1093, 112
      %v1336 = vpop.permute.xlu0 %1335
      %1337 = vrot.lane.b32.xlu0 %v1108, 112
      %v1338 = vpop.permute.xlu0 %1337
      %1339 = vrot.lane.b32.xlu0 %v1123, 112
      %v1340 = vpop.permute.xlu0 %1339
      %1341 = vrot.lane.b32.xlu0 %v1138, 112
      %v1342 = vpop.permute.xlu0 %1341
      %1343 = vrot.lane.b32.xlu0 %v1153, 112
      %v1344 = vpop.permute.xlu0 %1343
      %1345 = vrot.lane.b32.xlu0 %v1168, 112
      %v1346 = vpop.permute.xlu0 %1345
      %1347 = vrot.lane.b32.xlu0 %v1183, 112
      %v1348 = vpop.permute.xlu0 %1347
      %1349 = vrot.lane.b32.xlu0 %v1198, 112
      %v1350 = vpop.permute.xlu0 %1349
      %1351 = vrot.lane.b32.xlu0 %v1213, 112
      %v1352 = vpop.permute.xlu0 %1351
      %1353 = vrot.lane.b32.xlu0 %v1228, 112
      %v1354 = vpop.permute.xlu0 %1353
      %1355 = vrot.lane.b32.xlu0 %v1243, 112
      %v1356 = vpop.permute.xlu0 %1355
      %1357 = vrot.lane.b32.xlu0 %v1258, 112
      %v1358 = vpop.permute.xlu0 %1357
      %1359 = vrot.lane.b32.xlu0 %v1273, 112
      %v1360 = vpop.permute.xlu0 %1359
      %1361 = vrot.lane.b32.xlu0 %v1288, 112
      %v1362 = vpop.permute.xlu0 %1361
      %1363 = vrot.lane.b32.xlu0 %v1303, 112
      %v1364 = vpop.permute.xlu0 %1363
      %1365 = vrot.lane.b32.xlu0 %v1318, 112
      %v1366 = vpop.permute.xlu0 %1365
      %v1383 = vmul.f32 %v999, %v1336
      %v1384 = vmul.f32 %v1000, %v1338
      %v1385 = vmul.f32 %v1001, %v1340
      %v1386 = vmul.f32 %v1002, %v1342
      %v1387 = vmul.f32 %v1003, %v1344
      %v1388 = vmul.f32 %v1004, %v1346
      %v1389 = vmul.f32 %v1005, %v1348
      %v1390 = vmul.f32 %v1006, %v1350
      %v1391 = vmul.f32 %v1007, %v1352
      %v1392 = vmul.f32 %v1008, %v1354
      %v1393 = vmul.f32 %v1009, %v1356
      %v1394 = vmul.f32 %v1010, %v1358
      %v1395 = vmul.f32 %v1011, %v1360
      %v1396 = vmul.f32 %v1012, %v1362
      %v1397 = vmul.f32 %v1013, %v1364
      %v1398 = vmul.f32 %v1014, %v1366
      %v1399 = vpack.c.bf16 %v1384, %v1383
      %v1400 = vpack.c.bf16 %v1386, %v1385
      %v1401 = vpack.c.bf16 %v1388, %v1387
      %v1402 = vpack.c.bf16 %v1390, %v1389
      %v1403 = vpack.c.bf16 %v1392, %v1391
      %v1404 = vpack.c.bf16 %v1394, %v1393
      %v1405 = vpack.c.bf16 %v1396, %v1395
      %v1406 = vpack.c.bf16 %v1398, %v1397
      %v1407 = vld [vmem:[%s331] sm:$0xf]
      %v1408 = vld [vmem:[%s331 + $0x4] sm:$0xf]
      %v1411 = vunpack.c.l.b16 %v1407
      %v1412 = vunpack.c.l.b16 %v1408
      %v1413 = vpack.c.b16 %v1412, %v1411
      %vm1415 = vcmask 130048
      %v1417 = vsel %vm1415, %v1399, 0
      %v1420 = vsel %vm1415, %v1400, 0
      %v1423 = vsel %vm1415, %v1401, 0
      %v1426 = vsel %vm1415, %v1402, 0
      %v1429 = vsel %vm1415, %v1403, 0
      %v1432 = vsel %vm1415, %v1404, 0
      %v1435 = vsel %vm1415, %v1405, 0
      %v1438 = vsel %vm1415, %v1406, 0
      %1440 = vmatpush.bf16.msra.mxu0 0
      %1441 = vmatpush.bf16.msra.mxu0 0
      %1442 = vmatpush.bf16.msra.mxu0 0
      %1443 = vmatpush.bf16.msra.mxu0 0
      %1444 = vmatpush.bf16.msra.mxu0 0
      %1445 = vmatpush.bf16.msra.mxu0 0
      %1446 = vmatpush.bf16.msra.mxu0 0
      %1447 = vmatpush.bf16.msra.mxu0 %v1413
      %1448 = vmatmul.bf16.gmra.mxu0 %v1417
      %v1449 = vpop.f32.mrf.mxu0
      %v1450 = vadd.f32 0.0, %v1449
      %v1451 = vpop.f32.mrf.mxu0
      %v1452 = vadd.f32 0.0, %v1451
      %1453 = vmatmul.bf16.gmra.mxu0 %v1420
      %v1454 = vpop.f32.mrf.mxu0
      %v1455 = vadd.f32 0.0, %v1454
      %v1456 = vpop.f32.mrf.mxu0
      %v1457 = vadd.f32 0.0, %v1456
      %1458 = vmatmul.bf16.gmra.mxu0 %v1423
      %v1459 = vpop.f32.mrf.mxu0
      %v1460 = vadd.f32 0.0, %v1459
      %v1461 = vpop.f32.mrf.mxu0
      %v1462 = vadd.f32 0.0, %v1461
      %1463 = vmatmul.bf16.gmra.mxu0 %v1426
      %v1464 = vpop.f32.mrf.mxu0
      %v1465 = vadd.f32 0.0, %v1464
      %v1466 = vpop.f32.mrf.mxu0
      %v1467 = vadd.f32 0.0, %v1466
      %1468 = vmatmul.bf16.gmra.mxu0 %v1429
      %v1469 = vpop.f32.mrf.mxu0
      %v1470 = vadd.f32 0.0, %v1469
      %v1471 = vpop.f32.mrf.mxu0
      %v1472 = vadd.f32 0.0, %v1471
      %1473 = vmatmul.bf16.gmra.mxu0 %v1432
      %v1474 = vpop.f32.mrf.mxu0
      %v1475 = vadd.f32 0.0, %v1474
      %v1476 = vpop.f32.mrf.mxu0
      %v1477 = vadd.f32 0.0, %v1476
      %1478 = vmatmul.bf16.gmra.mxu0 %v1435
      %v1479 = vpop.f32.mrf.mxu0
      %v1480 = vadd.f32 0.0, %v1479
      %v1481 = vpop.f32.mrf.mxu0
      %v1482 = vadd.f32 0.0, %v1481
      %1483 = vmatmul.bf16.gmra.mxu0 %v1438
      %v1484 = vpop.f32.mrf.mxu0
      %v1485 = vadd.f32 0.0, %v1484
      %v1486 = vpop.f32.mrf.mxu0
      %v1487 = vadd.f32 0.0, %v1486
      %1488 = vdwg.mxu0
      %v1489 = vadd.f32 %v617, %v1450
      %v1490 = vadd.f32 %v618, %v1452
      %v1491 = vadd.f32 %v619, %v1455
      %v1492 = vadd.f32 %v620, %v1457
      %v1493 = vadd.f32 %v621, %v1460
      %v1494 = vadd.f32 %v622, %v1462
      %v1495 = vadd.f32 %v623, %v1465
      %v1496 = vadd.f32 %v624, %v1467
      %1497 = vst.msk [vmem:[#allocation2 + $0x8] sm:$0xff] %vm1415, %v1489
      %1498 = vst.msk [vmem:[#allocation2 + $0x10] sm:$0xff] %vm1415, %v1490
      %1499 = vst.msk [vmem:[#allocation2 + $0x18] sm:$0xff] %vm1415, %v1491
      %1500 = vst.msk [vmem:[#allocation2 + $0x20] sm:$0xff] %vm1415, %v1492
      %1501 = vst.msk [vmem:[#allocation2 + $0x28] sm:$0xff] %vm1415, %v1493
      %1502 = vst.msk [vmem:[#allocation2 + $0x30] sm:$0xff] %vm1415, %v1494
      %1503 = vst.msk [vmem:[#allocation2 + $0x38] sm:$0xff] %vm1415, %v1495
      %1504 = vst.msk [vmem:[#allocation2 + $0x40] sm:$0xff] %vm1415, %v1496
      %v1505 = vld [vmem:[%s767 + $0x8] sm:$0xff]
      %v1506 = vld [vmem:[%s767 + $0x10] sm:$0xff]
      %v1507 = vld [vmem:[%s767 + $0x18] sm:$0xff]
      %v1508 = vld [vmem:[%s767 + $0x20] sm:$0xff]
      %v1509 = vld [vmem:[%s767 + $0x28] sm:$0xff]
      %v1510 = vld [vmem:[%s767 + $0x30] sm:$0xff]
      %v1511 = vld [vmem:[%s767 + $0x38] sm:$0xff]
      %v1512 = vld [vmem:[%s767 + $0x40] sm:$0xff]
      %v1513 = vadd.f32 %v1505, %v1470
      %v1514 = vadd.f32 %v1506, %v1472
      %v1515 = vadd.f32 %v1507, %v1475
      %v1516 = vadd.f32 %v1508, %v1477
      %v1517 = vadd.f32 %v1509, %v1480
      %v1518 = vadd.f32 %v1510, %v1482
      %v1519 = vadd.f32 %v1511, %v1485
      %v1520 = vadd.f32 %v1512, %v1487
      %1521 = vst.msk [vmem:[%s767 + $0x8] sm:$0xff] %vm1415, %v1513
      %1522 = vst.msk [vmem:[%s767 + $0x10] sm:$0xff] %vm1415, %v1514
      %1523 = vst.msk [vmem:[%s767 + $0x18] sm:$0xff] %vm1415, %v1515
      %1524 = vst.msk [vmem:[%s767 + $0x20] sm:$0xff] %vm1415, %v1516
      %1525 = vst.msk [vmem:[%s767 + $0x28] sm:$0xff] %vm1415, %v1517
      %1526 = vst.msk [vmem:[%s767 + $0x30] sm:$0xff] %vm1415, %v1518
      %1527 = vst.msk [vmem:[%s767 + $0x38] sm:$0xff] %vm1415, %v1519
      %1528 = vst.msk [vmem:[%s767 + $0x40] sm:$0xff] %vm1415, %v1520
      %v1529 = vld [vmem:[#allocation3] sm:$0xff]
      %v1530 = vld [vmem:[#allocation3 + $0x8] sm:$0xff]
      %v1531 = vld [vmem:[#allocation3 + $0x10] sm:$0xff]
      %v1532 = vld [vmem:[#allocation3 + $0x18] sm:$0xff]
      %v1533 = vld [vmem:[#allocation3 + $0x20] sm:$0xff]
      %v1534 = vld [vmem:[#allocation3 + $0x28] sm:$0xff]
      %v1535 = vld [vmem:[#allocation3 + $0x30] sm:$0xff]
      %v1536 = vld [vmem:[#allocation3 + $0x38] sm:$0xff]
      %v1537 = vld [vmem:[#allocation3 + $0x40] sm:$0xff]
      %v1538 = vld [vmem:[#allocation3 + $0x48] sm:$0xff]
      %v1539 = vld [vmem:[#allocation3 + $0x50] sm:$0xff]
      %v1540 = vld [vmem:[#allocation3 + $0x58] sm:$0xff]
      %v1541 = vld [vmem:[#allocation3 + $0x60] sm:$0xff]
      %v1542 = vld [vmem:[#allocation3 + $0x68] sm:$0xff]
      %v1543 = vld [vmem:[#allocation3 + $0x70] sm:$0xff]
      %v1544 = vld [vmem:[#allocation3 + $0x78] sm:$0xff]
      %1561 = vrot.lane.b32.xlu0 %v1450, 112
      %v1562 = vpop.permute.xlu0 %1561
      %1563 = vrot.lane.b32.xlu0 %v1452, 112
      %v1564 = vpop.permute.xlu0 %1563
      %1565 = vrot.lane.b32.xlu0 %v1455, 112
      %v1566 = vpop.permute.xlu0 %1565
      %1567 = vrot.lane.b32.xlu0 %v1457, 112
      %v1568 = vpop.permute.xlu0 %1567
      %1569 = vrot.lane.b32.xlu0 %v1460, 112
      %v1570 = vpop.permute.xlu0 %1569
      %1571 = vrot.lane.b32.xlu0 %v1462, 112
      %v1572 = vpop.permute.xlu0 %1571
      %1573 = vrot.lane.b32.xlu0 %v1465, 112
      %v1574 = vpop.permute.xlu0 %1573
      %1575 = vrot.lane.b32.xlu0 %v1467, 112
      %v1576 = vpop.permute.xlu0 %1575
      %1577 = vrot.lane.b32.xlu0 %v1470, 112
      %v1578 = vpop.permute.xlu0 %1577
      %1579 = vrot.lane.b32.xlu0 %v1472, 112
      %v1580 = vpop.permute.xlu0 %1579
      %1581 = vrot.lane.b32.xlu0 %v1475, 112
      %v1582 = vpop.permute.xlu0 %1581
      %1583 = vrot.lane.b32.xlu0 %v1477, 112
      %v1584 = vpop.permute.xlu0 %1583
      %1585 = vrot.lane.b32.xlu0 %v1480, 112
      %v1586 = vpop.permute.xlu0 %1585
      %1587 = vrot.lane.b32.xlu0 %v1482, 112
      %v1588 = vpop.permute.xlu0 %1587
      %1589 = vrot.lane.b32.xlu0 %v1485, 112
      %v1590 = vpop.permute.xlu0 %1589
      %1591 = vrot.lane.b32.xlu0 %v1487, 112
      %v1592 = vpop.permute.xlu0 %1591
      %v1609 = vadd.f32 %v1529, %v1562
      %v1610 = vadd.f32 %v1530, %v1564
      %v1611 = vadd.f32 %v1531, %v1566
      %v1612 = vadd.f32 %v1532, %v1568
      %v1613 = vadd.f32 %v1533, %v1570
      %v1614 = vadd.f32 %v1534, %v1572
      %v1615 = vadd.f32 %v1535, %v1574
      %v1616 = vadd.f32 %v1536, %v1576
      %v1617 = vadd.f32 %v1537, %v1578
      %v1618 = vadd.f32 %v1538, %v1580
      %v1619 = vadd.f32 %v1539, %v1582
      %v1620 = vadd.f32 %v1540, %v1584
      %v1621 = vadd.f32 %v1541, %v1586
      %v1622 = vadd.f32 %v1542, %v1588
      %v1623 = vadd.f32 %v1543, %v1590
      %v1624 = vadd.f32 %v1544, %v1592
      %1625 = vst.msk [vmem:[#allocation3] sm:$0xff] %vm1415, %v1609
      %1626 = vst.msk [vmem:[#allocation3 + $0x8] sm:$0xff] %vm1415, %v1610
      %1627 = vst.msk [vmem:[#allocation3 + $0x10] sm:$0xff] %vm1415, %v1611
      %1628 = vst.msk [vmem:[#allocation3 + $0x18] sm:$0xff] %vm1415, %v1612
      %1629 = vst.msk [vmem:[#allocation3 + $0x20] sm:$0xff] %vm1415, %v1613
      %1630 = vst.msk [vmem:[#allocation3 + $0x28] sm:$0xff] %vm1415, %v1614
      %1631 = vst.msk [vmem:[#allocation3 + $0x30] sm:$0xff] %vm1415, %v1615
      %1632 = vst.msk [vmem:[#allocation3 + $0x38] sm:$0xff] %vm1415, %v1616
      %1633 = vst.msk [vmem:[#allocation3 + $0x40] sm:$0xff] %vm1415, %v1617
      %1634 = vst.msk [vmem:[#allocation3 + $0x48] sm:$0xff] %vm1415, %v1618
      %1635 = vst.msk [vmem:[#allocation3 + $0x50] sm:$0xff] %vm1415, %v1619
      %1636 = vst.msk [vmem:[#allocation3 + $0x58] sm:$0xff] %vm1415, %v1620
      %1637 = vst.msk [vmem:[#allocation3 + $0x60] sm:$0xff] %vm1415, %v1621
      %1638 = vst.msk [vmem:[#allocation3 + $0x68] sm:$0xff] %vm1415, %v1622
      %1639 = vst.msk [vmem:[#allocation3 + $0x70] sm:$0xff] %vm1415, %v1623
      %1640 = vst.msk [vmem:[#allocation3 + $0x78] sm:$0xff] %vm1415, %v1624
      %p1641 = scmp.eq.s32.totalorder %s31, 3
      // Predicated region
      $region49: #{tpu_custom_call.1} parent=43 // pred_check
        %p1642 = pneg %p1641
      $region50: #{tpu_custom_call.1} parent=43 // pred_check_branch
        %1644 = sbr.rel (%p1642) target = $region52
      $region51: #{tpu_custom_call.1} parent=43 // pred_region
        %v1645 = vld [vmem:[#allocation3] sm:$0xff]
        %v1646 = vld [vmem:[#allocation3 + $0x8] sm:$0xff]
        %v1647 = vld [vmem:[#allocation3 + $0x10] sm:$0xff]
        %v1648 = vld [vmem:[#allocation3 + $0x18] sm:$0xff]
        %v1649 = vld [vmem:[#allocation3 + $0x20] sm:$0xff]
        %v1650 = vld [vmem:[#allocation3 + $0x28] sm:$0xff]
        %v1651 = vld [vmem:[#allocation3 + $0x30] sm:$0xff]
        %v1652 = vld [vmem:[#allocation3 + $0x38] sm:$0xff]
        %v1653 = vld [vmem:[#allocation3 + $0x40] sm:$0xff]
        %v1654 = vld [vmem:[#allocation3 + $0x48] sm:$0xff]
        %v1655 = vld [vmem:[#allocation3 + $0x50] sm:$0xff]
        %v1656 = vld [vmem:[#allocation3 + $0x58] sm:$0xff]
        %v1657 = vld [vmem:[#allocation3 + $0x60] sm:$0xff]
        %v1658 = vld [vmem:[#allocation3 + $0x68] sm:$0xff]
        %v1659 = vld [vmem:[#allocation3 + $0x70] sm:$0xff]
        %v1660 = vld [vmem:[#allocation3 + $0x78] sm:$0xff]
        %v1661 = vpack.c.bf16 %v1646, %v1645
        %v1662 = vpack.c.bf16 %v1648, %v1647
        %v1663 = vpack.c.bf16 %v1650, %v1649
        %v1664 = vpack.c.bf16 %v1652, %v1651
        %v1665 = vpack.c.bf16 %v1654, %v1653
        %v1666 = vpack.c.bf16 %v1656, %v1655
        %v1667 = vpack.c.bf16 %v1658, %v1657
        %v1668 = vpack.c.bf16 %v1660, %v1659
        %v1669 = vld [vmem:[%s6] sm:$0xf]
        %v1670 = vld [vmem:[%s6 + $0x4] sm:$0xf]
        %v1673 = vunpack.c.l.b16 %v1669
        %v1674 = vunpack.c.l.b16 %v1670
        %v1675 = vpack.c.b16 %v1674, %v1673
        %v1678 = vsel %vm1415, %v1661, 0
        %v1681 = vsel %vm1415, %v1662, 0
        %v1684 = vsel %vm1415, %v1663, 0
        %v1687 = vsel %vm1415, %v1664, 0
        %v1690 = vsel %vm1415, %v1665, 0
        %v1693 = vsel %vm1415, %v1666, 0
        %v1696 = vsel %vm1415, %v1667, 0
        %v1699 = vsel %vm1415, %v1668, 0
        %1701 = vmatpush.bf16.msra.mxu0 0
        %1702 = vmatpush.bf16.msra.mxu0 0
        %1703 = vmatpush.bf16.msra.mxu0 0
        %1704 = vmatpush.bf16.msra.mxu0 0
        %1705 = vmatpush.bf16.msra.mxu0 0
        %1706 = vmatpush.bf16.msra.mxu0 0
        %1707 = vmatpush.bf16.msra.mxu0 0
        %1708 = vmatpush.bf16.msra.mxu0 %v1675
        %1709 = vmatmul.bf16.gmra.mxu0 %v1678
        %v1710 = vpop.f32.mrf.mxu0
        %v1711 = vadd.f32 0.0, %v1710
        %v1712 = vpop.f32.mrf.mxu0
        %v1713 = vadd.f32 0.0, %v1712
        %1714 = vmatmul.bf16.gmra.mxu0 %v1681
        %v1715 = vpop.f32.mrf.mxu0
        %v1716 = vadd.f32 0.0, %v1715
        %v1717 = vpop.f32.mrf.mxu0
        %v1718 = vadd.f32 0.0, %v1717
        %1719 = vmatmul.bf16.gmra.mxu0 %v1684
        %v1720 = vpop.f32.mrf.mxu0
        %v1721 = vadd.f32 0.0, %v1720
        %v1722 = vpop.f32.mrf.mxu0
        %v1723 = vadd.f32 0.0, %v1722
        %1724 = vmatmul.bf16.gmra.mxu0 %v1687
        %v1725 = vpop.f32.mrf.mxu0
        %v1726 = vadd.f32 0.0, %v1725
        %v1727 = vpop.f32.mrf.mxu0
        %v1728 = vadd.f32 0.0, %v1727
        %1729 = vmatmul.bf16.gmra.mxu0 %v1690
        %v1730 = vpop.f32.mrf.mxu0
        %v1731 = vadd.f32 0.0, %v1730
        %v1732 = vpop.f32.mrf.mxu0
        %v1733 = vadd.f32 0.0, %v1732
        %1734 = vmatmul.bf16.gmra.mxu0 %v1693
        %v1735 = vpop.f32.mrf.mxu0
        %v1736 = vadd.f32 0.0, %v1735
        %v1737 = vpop.f32.mrf.mxu0
        %v1738 = vadd.f32 0.0, %v1737
        %1739 = vmatmul.bf16.gmra.mxu0 %v1696
        %v1740 = vpop.f32.mrf.mxu0
        %v1741 = vadd.f32 0.0, %v1740
        %v1742 = vpop.f32.mrf.mxu0
        %v1743 = vadd.f32 0.0, %v1742
        %1744 = vmatmul.bf16.gmra.mxu0 %v1699
        %v1745 = vpop.f32.mrf.mxu0
        %v1746 = vadd.f32 0.0, %v1745
        %v1747 = vpop.f32.mrf.mxu0
        %v1748 = vadd.f32 0.0, %v1747
        %1749 = vdwg.mxu0
        %vm1750 = vcmask 64512
        %1751 = vst.msk [vmem:[%s336] sm:$0xff] %vm1750, %v1711
        %1752 = vst.msk [vmem:[%s336 + $0x8] sm:$0xff] %vm1750, %v1713
        %1753 = vst.msk [vmem:[%s336 + $0x10] sm:$0xff] %vm1750, %v1716
        %1754 = vst.msk [vmem:[%s336 + $0x18] sm:$0xff] %vm1750, %v1718
        %1755 = vst.msk [vmem:[%s336 + $0x20] sm:$0xff] %vm1750, %v1721
        %1756 = vst.msk [vmem:[%s336 + $0x28] sm:$0xff] %vm1750, %v1723
        %1757 = vst.msk [vmem:[%s336 + $0x30] sm:$0xff] %vm1750, %v1726
        %1758 = vst.msk [vmem:[%s336 + $0x38] sm:$0xff] %vm1750, %v1728
        %1759 = vst.msk [vmem:[%s336 + $0x40] sm:$0xff] %vm1750, %v1731
        %1760 = vst.msk [vmem:[%s336 + $0x48] sm:$0xff] %vm1750, %v1733
        %1761 = vst.msk [vmem:[%s336 + $0x50] sm:$0xff] %vm1750, %v1736
        %1762 = vst.msk [vmem:[%s336 + $0x58] sm:$0xff] %vm1750, %v1738
        %1763 = vst.msk [vmem:[%s336 + $0x60] sm:$0xff] %vm1750, %v1741
        %1764 = vst.msk [vmem:[%s336 + $0x68] sm:$0xff] %vm1750, %v1743
        %1765 = vst.msk [vmem:[%s336 + $0x70] sm:$0xff] %vm1750, %v1746
        %1766 = vst.msk [vmem:[%s336 + $0x78] sm:$0xff] %vm1750, %v1748
      $region52: #{tpu_custom_call.1} parent=43 // pred_fallthru
        _
      %s1767 = smul.u32 16, %s30
      %p1768 = scmp.lt.s32.totalorder %s1767, 15
      %s1769 = scalar_select %p1768, %s1767, 15
      %s1770 = smul.addr %s1769, 8
      %s1771 = scalar_lea.vmem %s7, %s1770
      // Predicated region
      $region53: #{tpu_custom_call.1} parent=43 // pred_check
        %p1772 = pneg %p202
      $region54: #{tpu_custom_call.1} parent=43 // pred_check_branch
        %1774 = sbr.rel (%p1772) target = $region56
      $region55: #{tpu_custom_call.1} parent=43 // pred_region
        %s1775 = smul.u32 16, %s30
      $region56: #{tpu_custom_call.1} parent=43 // pred_fallthru
        _
      // Predicated region
      $region57: #{tpu_custom_call.1} parent=43 // pred_check
        %p1776 = pneg %p202
      $region58: #{tpu_custom_call.1} parent=43 // pred_check_branch
        %1778 = sbr.rel (%p1776) target = $region60
      $region59: #{tpu_custom_call.1} parent=43 // pred_region
        %s1779 = smul.u32 16, %s30
        %p1780 = scmp.lt.s32.totalorder %s1779, 15
        %s1781 = scalar_select %p1780, %s1779, 15
        %s1782 = smul.addr %s1781, 8
        %s1783 = scalar_lea.vmem %s7, %s1782
      $region60: #{tpu_custom_call.1} parent=43 // pred_fallthru
        _
    $region44: #{tpu_custom_call.1} parent=5 // pred_fallthru
      _
    %p1784 = scmp.le.s32.totalorder 2, %s21
    // Predicated region
    $region61: #{tpu_custom_call.1} parent=5 // pred_check
      %p1785 = pneg %p1784
    $region62: #{tpu_custom_call.1} parent=5 // pred_check_branch
      %1787 = sbr.rel (%p1785) target = $region64
    $region63: #{tpu_custom_call.1} parent=5 // pred_region
      %s1788 = ssub.s32 %s21, 2
    $region64: #{tpu_custom_call.1} parent=5 // pred_fallthru
      _
  $region6: #{tpu_custom_call.1} parent=0 // loop_footer
    %s25 = sadd.s32 1, %s21
  $region7: #{tpu_custom_call.1} parent=0 // loop_footer_branch
    %20 = sbr.rel target = $region3
  $region8: #{tpu_custom_call.1} parent=0 // loop_exit
    _

</llo_original>
